<compile_context>
chip_gen: v6e
topology: v6e:2x2x1
jax: 0.10.0
libtpu: 0.0.40
codegen_flags: <defaults>
</compile_context>

<pallas_src>
import functools

import jax
import jax.numpy as jnp
from jax.experimental import pallas as pl
from jax.experimental.pallas import tpu as pltpu

EPS = 1e-5


def banded_weight(w_hwio, W):
    """Fold the dx taps and the W-boundary zero padding of a 3x3/pad-1 conv
    into per-dy block-banded matrices so each conv is 3 accumulated matmuls.

    w_hwio: (3, 3, Cin, Cout) -> (3, W*Cin, W*Cout)
    block dy, row (w, ci), col (w2, co) holds w_hwio[dy, w - w2 + 1, ci, co]
    when |w - w2| <= 1, else 0.
    """
    KH, KW, Cin, Cout = w_hwio.shape
    w_idx = jnp.arange(W)[:, None]
    w2_idx = jnp.arange(W)[None, :]
    dx = w_idx - w2_idx + 1                                   # (W, W)
    valid = (dx >= 0) & (dx < KW)
    taps = w_hwio[:, jnp.clip(dx, 0, KW - 1)]                 # (KH, W, W, Cin, Cout)
    taps = jnp.where(valid[None, :, :, None, None], taps, 0.0)
    banded = jnp.transpose(taps, (0, 1, 3, 2, 4))             # (KH, W, Cin, W, Cout)
    return banded.reshape(KH, W * Cin, W * Cout)


def baseblock_kernel(x_ref, bw1_ref, bw2_ref, g1_ref, be1_ref,
                     g2_ref, be2_ref, gsum_ref, expand_ref, out_ref, *, h):
    # x_ref      : (N*H, W*C)    f32   lane-dense input rows (also the residual)
    # bw*_ref    : (3, W*C, W*C) bf16  per-dy block-banded conv weights
    # g*/be*_ref : (1, C)        f32   BN gamma / beta
    # gsum_ref   : (W*C, C)      f32   0/1 lane-group -> channel fold
    # expand_ref : (C, W*C)      f32   0/1 channel -> lane-group expand (gsum^T)
    # out_ref    : (N*H, W*C)    f32
    R, WC = x_ref.shape
    C = g1_ref.shape[-1]
    W = WC // C
    H = h
    inv_cnt = 1.0 / float(R * W)          # 1 / (N*H*W) samples per channel

    # Per-row H index (rows are (n, h), h fastest) -> halo masks for the convs.
    row_h = jax.lax.broadcasted_iota(jnp.int32, (R, WC), 0) % H
    is_top = row_h == 0
    is_bot = row_h == H - 1

    def taps(y):
        # dy-shifted row windows of a 3x3 / pad-1 conv, built with sublane
        # rotations (XLU, free slot here) + H-boundary masks.  No VMEM scratch
        # round-trip, no lane-axis concat, no misaligned slice relayouts.
        up = jnp.where(is_top, 0.0, pltpu.roll(y, 1, 0))       # row r-1 (dy=0)
        dn = jnp.where(is_bot, 0.0, pltpu.roll(y, R - 1, 0))   # row r+1 (dy=2)
        return (up.astype(jnp.bfloat16),
                y.astype(jnp.bfloat16),
                dn.astype(jnp.bfloat16))

    def conv(t, bw_ref):
        # Three accumulated (R,WC)x(WC,WC) MXU matmuls, one per dy tap.
        acc = jnp.dot(t[0], bw_ref[0], preferred_element_type=jnp.float32)
        acc = acc + jnp.dot(t[1], bw_ref[1], preferred_element_type=jnp.float32)
        acc = acc + jnp.dot(t[2], bw_ref[2], preferred_element_type=jnp.float32)
        return acc                                             # (R, WC) f32

    def bn(y, g_ref, be_ref, relu):
        # Training-mode BN, single pass: sum + sum-of-squares over rows, fold
        # the W lane-groups per channel with a tiny 0/1 matmul, then apply
        # y*scale + shift with an MXU lane expansion of the (1,C) factors.
        s = jnp.sum(y, axis=0, keepdims=True)                  # (1, WC)
        ss = jnp.sum(y * y, axis=0, keepdims=True)             # (1, WC)
        gsum = gsum_ref[...]                                   # (WC, C)
        mean = jnp.dot(s, gsum, preferred_element_type=jnp.float32) * inv_cnt
        ex2 = jnp.dot(ss, gsum, preferred_element_type=jnp.float32) * inv_cnt
        var = ex2 - mean * mean                                # biased variance
        scale = g_ref[...] * jax.lax.rsqrt(var + EPS)          # (1, C)
        shift = be_ref[...] - mean * scale                     # (1, C)
        scale_wc = jnp.dot(scale, expand_ref[...],
                           preferred_element_type=jnp.float32)  # (1, WC)
        shift_wc = jnp.dot(shift, expand_ref[...],
                           preferred_element_type=jnp.float32)  # (1, WC)
        out = y * scale_wc + shift_wc
        return jnp.maximum(out, 0.0) if relu else out

    x = x_ref[...]                                             # f32; residual too

    # conv1 -> bn1 -> relu   (conv bias omitted: exactly cancelled by the
    # training-mode BN mean subtraction)
    y1 = bn(conv(taps(x), bw1_ref), g1_ref, be1_ref, relu=True)

    # conv2 -> bn2 -> identity residual add -> relu; y1 stays in registers.
    y2 = bn(conv(taps(y1), bw2_ref), g2_ref, be2_ref, relu=False)
    out_ref[...] = jnp.maximum(y2 + x, 0.0)


def baseblock_forward(x_nchw, params):
    """x_nchw: (N, C, H, W) float32; params: (w1,b1,g1,be1,w2,b2,g2,be2)."""
    w1, b1, g1, be1, w2, b2, g2, be2 = params
    del b1, b2  # conv bias before training-mode BN is cancelled by mean subtraction
    N, C, H, W = x_nchw.shape
    Cout = w1.shape[-1]
    assert w1.shape[2] == C and w2.shape[2] == Cout and Cout == C, \
        "identity residual (dim_change=None) requires input_planes == planes"
    WC = W * C
    assert WC % 128 == 0, "lane-dense layout requires W*C to be a multiple of 128"

    # NCHW -> lane-dense rows (N*H, W*C). No H halo padding needed: the kernel
    # builds the dy taps with sublane rotations + boundary masks.
    x_rows = jnp.transpose(x_nchw, (0, 2, 3, 1)).reshape(N * H, WC)

    bw1 = banded_weight(w1, W).astype(jnp.bfloat16)            # (3, WC, WC)
    bw2 = banded_weight(w2, W).astype(jnp.bfloat16)
    gsum = jnp.tile(jnp.eye(C, dtype=jnp.float32), (W, 1))     # (WC, C)
    expand = jnp.transpose(gsum)                               # (C, WC)

    vmem = pl.BlockSpec(memory_space=pltpu.MemorySpace.VMEM)
    out = pl.pallas_call(
        functools.partial(baseblock_kernel, h=H),
        out_shape=jax.ShapeDtypeStruct((N * H, WC), jnp.float32),
        in_specs=[vmem] * 9,
        out_specs=vmem,
        compiler_params=pltpu.CompilerParams(
            vmem_limit_bytes=32 * 1024 * 1024),
    )(x_rows, bw1, bw2,
      g1.reshape(1, Cout), be1.reshape(1, Cout),
      g2.reshape(1, Cout), be2.reshape(1, Cout), gsum, expand)

    return jnp.transpose(out.reshape(N, H, W, Cout), (0, 3, 1, 2))


def ref_forward(x_nchw, params, conv_dtype=jnp.float32):
    """Pure-JAX reference (NCHW, like PyTorch). conv_dtype lets us mirror the
    kernel's bf16 conv-operand policy for a tight numerical check."""
    w1, b1, g1, be1, w2, b2, g2, be2 = params

    def conv(x, w, b):
        y = jax.lax.conv_general_dilated(
            x.astype(conv_dtype), w.astype(conv_dtype),
            window_strides=(1, 1), padding="SAME",
            dimension_numbers=("NCHW", "HWIO", "NCHW"),
            preferred_element_type=jnp.float32)
        return y + b.reshape(1, -1, 1, 1)

    def bn(y, g, be):
        mean = y.mean(axis=(0, 2, 3), keepdims=True)
        var = ((y - mean) ** 2).mean(axis=(0, 2, 3), keepdims=True)
        return (y - mean) / jnp.sqrt(var + EPS) * g.reshape(1, -1, 1, 1) \
            + be.reshape(1, -1, 1, 1)

    out = jax.nn.relu(bn(conv(x_nchw, w1, b1), g1, be1))
    out = bn(conv(out, w2, b2), g2, be2)
    return jax.nn.relu(out + x_nchw)


def make_params(key, cin, planes):
    ks = jax.random.split(key, 8)
    fan1 = cin * 9
    fan2 = planes * 9
    u = lambda k, shape, fan: jax.random.uniform(
        k, shape, jnp.float32, -1.0, 1.0) / jnp.sqrt(float(fan))
    w1 = u(ks[0], (3, 3, cin, planes), fan1)        # HWIO
    b1 = u(ks[1], (1, planes), fan1)
    g1 = 1.0 + 0.1 * jax.random.normal(ks[2], (1, planes), jnp.float32)
    be1 = 0.1 * jax.random.normal(ks[3], (1, planes), jnp.float32)
    w2 = u(ks[4], (3, 3, planes, planes), fan2)
    b2 = u(ks[5], (1, planes), fan2)
    g2 = 1.0 + 0.1 * jax.random.normal(ks[6], (1, planes), jnp.float32)
    be2 = 0.1 * jax.random.normal(ks[7], (1, planes), jnp.float32)
    return (w1, b1, g1, be1, w2, b2, g2, be2)


if __name__ == "__main__":
    key = jax.random.PRNGKey(0)
    k_x, k_p = jax.random.split(key)

    # stride=1, dim_change=None -> input_planes == planes; W*C = 128 lanes.
    N, C, H, W = 2, 8, 16, 16
    planes = C

    x = jax.random.normal(k_x, (N, C, H, W), jnp.float32)
    params = make_params(k_p, C, planes)

    out = jax.block_until_ready(baseblock_forward(x, params))
    assert out.shape == (N, planes, H, W)

    # Tight check vs a reference using the same bf16 conv-operand policy.
    ref_bf16 = ref_forward(x, params, conv_dtype=jnp.bfloat16)
    err = jnp.max(jnp.abs(out - ref_bf16))
    assert jnp.allclose(out, ref_bf16, rtol=2e-3, atol=2e-3), \
        f"bf16-ref max abs err {err}"

    # Sanity check vs the full-f32 module forward (bf16 conv operands only
    # perturb the result slightly; BN re-normalizes).
    ref_f32 = ref_forward(x, params, conv_dtype=jnp.float32)
    err32 = jnp.max(jnp.abs(out - ref_f32))
    assert jnp.allclose(out, ref_f32, rtol=5e-2, atol=5e-2), \
        f"f32-ref max abs err {err32}"

    print("KERNEL_OK")
</pallas_src>

<mosaic_0001>
module attributes {stable_mosaic.version = 11 : i64} {
  func.func @baseblock_kernel(%arg0: memref<32x128xf32, #tpu.memory_space<vmem>>, %arg1: memref<3x128x128xbf16, #tpu.memory_space<vmem>>, %arg2: memref<3x128x128xbf16, #tpu.memory_space<vmem>>, %arg3: memref<1x8xf32, #tpu.memory_space<vmem>>, %arg4: memref<1x8xf32, #tpu.memory_space<vmem>>, %arg5: memref<1x8xf32, #tpu.memory_space<vmem>>, %arg6: memref<1x8xf32, #tpu.memory_space<vmem>>, %arg7: memref<128x8xf32, #tpu.memory_space<vmem>>, %arg8: memref<8x128xf32, #tpu.memory_space<vmem>>, %arg9: memref<32x128xf32, #tpu.memory_space<vmem>>) attributes {dimension_semantics = [], scalar_prefetch = 0 : i64, scratch_operands = 0 : i64, tpu.core_type = #tpu.core_type<tc>} {
    %0 = tpu.iota {dimensions = array<i32: 0>} : vector<32x128xi32>
    %c16_i32 = arith.constant 16 : i32
    %c0_i32 = arith.constant 0 : i32
    %1 = arith.cmpi eq, %c16_i32, %c0_i32 : i32
    %c1_i32 = arith.constant 1 : i32
    %2 = arith.select %1, %c1_i32, %c16_i32 : i32
    %3 = vector.broadcast %2 : i32 to vector<32x128xi32>
    %4 = arith.remsi %0, %3 : vector<32x128xi32>
    %c0_i32_0 = arith.constant 0 : i32
    %5 = vector.broadcast %c0_i32_0 : i32 to vector<32x128xi32>
    %6 = arith.cmpi ne, %4, %5 : vector<32x128xi32>
    %c0_i32_1 = arith.constant 0 : i32
    %7 = vector.broadcast %c0_i32_1 : i32 to vector<32x128xi32>
    %8 = arith.cmpi slt, %4, %7 : vector<32x128xi32>
    %c0_i32_2 = arith.constant 0 : i32
    %9 = arith.cmpi slt, %2, %c0_i32_2 : i32
    %10 = vector.broadcast %9 : i1 to vector<32x128xi1>
    %11 = vector.broadcast %10 : vector<32x128xi1> to vector<32x128xi1>
    %12 = arith.xori %8, %11 : vector<32x128xi1>
    %13 = arith.andi %12, %6 : vector<32x128xi1>
    %14 = vector.broadcast %2 : i32 to vector<32x128xi32>
    %15 = arith.addi %4, %14 : vector<32x128xi32>
    %16 = arith.select %13, %15, %4 : vector<32x128xi1>, vector<32x128xi32>
    %c0_i32_3 = arith.constant 0 : i32
    %17 = vector.broadcast %c0_i32_3 : i32 to vector<32x128xi32>
    %18 = arith.cmpi eq, %16, %17 : vector<32x128xi32>
    %c15_i32 = arith.constant 15 : i32
    %19 = vector.broadcast %c15_i32 : i32 to vector<32x128xi32>
    %20 = arith.cmpi eq, %16, %19 : vector<32x128xi32>
    %c0 = arith.constant 0 : index
    %c0_4 = arith.constant 0 : index
    %21 = vector.load %arg0[%c0, %c0_4] : memref<32x128xf32, #tpu.memory_space<vmem>>, vector<32x128xf32>
    %c1_i32_5 = arith.constant 1 : i32
    %22 = tpu.dynamic_rotate %21 by %c1_i32_5 dim 0 : vector<32x128xf32>, i32 -> vector<32x128xf32>
    %cst = arith.constant 0.000000e+00 : f32
    %23 = vector.broadcast %cst : f32 to vector<32x128xf32>
    %24 = arith.select %18, %23, %22 : vector<32x128xi1>, vector<32x128xf32>
    %c31_i32 = arith.constant 31 : i32
    %25 = tpu.dynamic_rotate %21 by %c31_i32 dim 0 : vector<32x128xf32>, i32 -> vector<32x128xf32>
    %cst_6 = arith.constant 0.000000e+00 : f32
    %26 = vector.broadcast %cst_6 : f32 to vector<32x128xf32>
    %27 = arith.select %20, %26, %25 : vector<32x128xi1>, vector<32x128xf32>
    %28 = arith.truncf %24 : vector<32x128xf32> to vector<32x128xbf16>
    %29 = arith.truncf %21 : vector<32x128xf32> to vector<32x128xbf16>
    %30 = arith.truncf %27 : vector<32x128xf32> to vector<32x128xbf16>
    %c0_7 = arith.constant 0 : index
    %c0_8 = arith.constant 0 : index
    %c0_9 = arith.constant 0 : index
    %31 = vector.load %arg1[%c0_7, %c0_8, %c0_9] : memref<3x128x128xbf16, #tpu.memory_space<vmem>>, vector<1x128x128xbf16>
    %32 = vector.shape_cast %31 : vector<1x128x128xbf16> to vector<128x128xbf16>
    %cst_10 = arith.constant dense<0.000000e+00> : vector<32x128xf32>
    %33 = tpu.matmul %28, %32, %cst_10 {dimension_numbers = #tpu.dot_dimension_numbers<[1], [0], [0], [1], [0, 0, 1, 1], [], []>} : vector<32x128xbf16>, vector<128x128xbf16>, vector<32x128xf32> -> vector<32x128xf32>
    %c1 = arith.constant 1 : index
    %c0_11 = arith.constant 0 : index
    %c0_12 = arith.constant 0 : index
    %34 = vector.load %arg1[%c1, %c0_11, %c0_12] : memref<3x128x128xbf16, #tpu.memory_space<vmem>>, vector<1x128x128xbf16>
    %35 = vector.shape_cast %34 : vector<1x128x128xbf16> to vector<128x128xbf16>
    %cst_13 = arith.constant dense<0.000000e+00> : vector<32x128xf32>
    %36 = tpu.matmul %29, %35, %cst_13 {dimension_numbers = #tpu.dot_dimension_numbers<[1], [0], [0], [1], [0, 0, 1, 1], [], []>} : vector<32x128xbf16>, vector<128x128xbf16>, vector<32x128xf32> -> vector<32x128xf32>
    %37 = arith.addf %33, %36 : vector<32x128xf32>
    %c2 = arith.constant 2 : index
    %c0_14 = arith.constant 0 : index
    %c0_15 = arith.constant 0 : index
    %38 = vector.load %arg1[%c2, %c0_14, %c0_15] : memref<3x128x128xbf16, #tpu.memory_space<vmem>>, vector<1x128x128xbf16>
    %39 = vector.shape_cast %38 : vector<1x128x128xbf16> to vector<128x128xbf16>
    %cst_16 = arith.constant dense<0.000000e+00> : vector<32x128xf32>
    %40 = tpu.matmul %30, %39, %cst_16 {dimension_numbers = #tpu.dot_dimension_numbers<[1], [0], [0], [1], [0, 0, 1, 1], [], []>} : vector<32x128xbf16>, vector<128x128xbf16>, vector<32x128xf32> -> vector<32x128xf32>
    %41 = arith.addf %37, %40 : vector<32x128xf32>
    %cst_17 = arith.constant dense<0.000000e+00> : vector<128xf32>
    %42 = vector.multi_reduction <add>, %41, %cst_17 [0] : vector<32x128xf32> to vector<128xf32>
    %43 = vector.shape_cast %42 : vector<128xf32> to vector<1x128xf32>
    %44 = arith.mulf %41, %41 : vector<32x128xf32>
    %cst_18 = arith.constant dense<0.000000e+00> : vector<128xf32>
    %45 = vector.multi_reduction <add>, %44, %cst_18 [0] : vector<32x128xf32> to vector<128xf32>
    %46 = vector.shape_cast %45 : vector<128xf32> to vector<1x128xf32>
    %c0_19 = arith.constant 0 : index
    %c0_20 = arith.constant 0 : index
    %47 = vector.load %arg7[%c0_19, %c0_20] : memref<128x8xf32, #tpu.memory_space<vmem>>, vector<128x8xf32>
    %cst_21 = arith.constant dense<0.000000e+00> : vector<1x8xf32>
    %48 = tpu.matmul %43, %47, %cst_21 {dimension_numbers = #tpu.dot_dimension_numbers<[1], [0], [0], [1], [0, 0, 1, 1], [], []>} : vector<1x128xf32>, vector<128x8xf32>, vector<1x8xf32> -> vector<1x8xf32>
    %cst_22 = arith.constant 0.001953125 : f32
    %49 = vector.broadcast %cst_22 : f32 to vector<1x8xf32>
    %50 = arith.mulf %48, %49 : vector<1x8xf32>
    %cst_23 = arith.constant dense<0.000000e+00> : vector<1x8xf32>
    %51 = tpu.matmul %46, %47, %cst_23 {dimension_numbers = #tpu.dot_dimension_numbers<[1], [0], [0], [1], [0, 0, 1, 1], [], []>} : vector<1x128xf32>, vector<128x8xf32>, vector<1x8xf32> -> vector<1x8xf32>
    %cst_24 = arith.constant 0.001953125 : f32
    %52 = vector.broadcast %cst_24 : f32 to vector<1x8xf32>
    %53 = arith.mulf %51, %52 : vector<1x8xf32>
    %54 = arith.mulf %50, %50 : vector<1x8xf32>
    %55 = arith.subf %53, %54 : vector<1x8xf32>
    %c0_25 = arith.constant 0 : index
    %c0_26 = arith.constant 0 : index
    %56 = vector.load %arg3[%c0_25, %c0_26] : memref<1x8xf32, #tpu.memory_space<vmem>>, vector<1x8xf32>
    %cst_27 = arith.constant 9.99999974E-6 : f32
    %57 = vector.broadcast %cst_27 : f32 to vector<1x8xf32>
    %58 = arith.addf %55, %57 : vector<1x8xf32>
    %59 = math.rsqrt %58 : vector<1x8xf32>
    %60 = arith.mulf %56, %59 : vector<1x8xf32>
    %c0_28 = arith.constant 0 : index
    %c0_29 = arith.constant 0 : index
    %61 = vector.load %arg4[%c0_28, %c0_29] : memref<1x8xf32, #tpu.memory_space<vmem>>, vector<1x8xf32>
    %62 = arith.mulf %50, %60 : vector<1x8xf32>
    %63 = arith.subf %61, %62 : vector<1x8xf32>
    %c0_30 = arith.constant 0 : index
    %c0_31 = arith.constant 0 : index
    %64 = vector.load %arg8[%c0_30, %c0_31] : memref<8x128xf32, #tpu.memory_space<vmem>>, vector<8x128xf32>
    %cst_32 = arith.constant dense<0.000000e+00> : vector<1x128xf32>
    %65 = tpu.matmul %60, %64, %cst_32 {dimension_numbers = #tpu.dot_dimension_numbers<[1], [0], [0], [1], [0, 0, 1, 1], [], []>} : vector<1x8xf32>, vector<8x128xf32>, vector<1x128xf32> -> vector<1x128xf32>
    %c0_33 = arith.constant 0 : index
    %c0_34 = arith.constant 0 : index
    %66 = vector.load %arg8[%c0_33, %c0_34] : memref<8x128xf32, #tpu.memory_space<vmem>>, vector<8x128xf32>
    %cst_35 = arith.constant dense<0.000000e+00> : vector<1x128xf32>
    %67 = tpu.matmul %63, %66, %cst_35 {dimension_numbers = #tpu.dot_dimension_numbers<[1], [0], [0], [1], [0, 0, 1, 1], [], []>} : vector<1x8xf32>, vector<8x128xf32>, vector<1x128xf32> -> vector<1x128xf32>
    %68 = vector.broadcast %65 : vector<1x128xf32> to vector<32x128xf32>
    %69 = arith.mulf %41, %68 : vector<32x128xf32>
    %70 = vector.broadcast %67 : vector<1x128xf32> to vector<32x128xf32>
    %71 = arith.addf %69, %70 : vector<32x128xf32>
    %cst_36 = arith.constant 0.000000e+00 : f32
    %72 = vector.broadcast %cst_36 : f32 to vector<32x128xf32>
    %73 = arith.maximumf %71, %72 : vector<32x128xf32>
    %c1_i32_37 = arith.constant 1 : i32
    %74 = tpu.dynamic_rotate %73 by %c1_i32_37 dim 0 : vector<32x128xf32>, i32 -> vector<32x128xf32>
    %cst_38 = arith.constant 0.000000e+00 : f32
    %75 = vector.broadcast %cst_38 : f32 to vector<32x128xf32>
    %76 = arith.select %18, %75, %74 : vector<32x128xi1>, vector<32x128xf32>
    %c31_i32_39 = arith.constant 31 : i32
    %77 = tpu.dynamic_rotate %73 by %c31_i32_39 dim 0 : vector<32x128xf32>, i32 -> vector<32x128xf32>
    %cst_40 = arith.constant 0.000000e+00 : f32
    %78 = vector.broadcast %cst_40 : f32 to vector<32x128xf32>
    %79 = arith.select %20, %78, %77 : vector<32x128xi1>, vector<32x128xf32>
    %80 = arith.truncf %76 : vector<32x128xf32> to vector<32x128xbf16>
    %81 = arith.truncf %73 : vector<32x128xf32> to vector<32x128xbf16>
    %82 = arith.truncf %79 : vector<32x128xf32> to vector<32x128xbf16>
    %c0_41 = arith.constant 0 : index
    %c0_42 = arith.constant 0 : index
    %c0_43 = arith.constant 0 : index
    %83 = vector.load %arg2[%c0_41, %c0_42, %c0_43] : memref<3x128x128xbf16, #tpu.memory_space<vmem>>, vector<1x128x128xbf16>
    %84 = vector.shape_cast %83 : vector<1x128x128xbf16> to vector<128x128xbf16>
    %cst_44 = arith.constant dense<0.000000e+00> : vector<32x128xf32>
    %85 = tpu.matmul %80, %84, %cst_44 {dimension_numbers = #tpu.dot_dimension_numbers<[1], [0], [0], [1], [0, 0, 1, 1], [], []>} : vector<32x128xbf16>, vector<128x128xbf16>, vector<32x128xf32> -> vector<32x128xf32>
    %c1_45 = arith.constant 1 : index
    %c0_46 = arith.constant 0 : index
    %c0_47 = arith.constant 0 : index
    %86 = vector.load %arg2[%c1_45, %c0_46, %c0_47] : memref<3x128x128xbf16, #tpu.memory_space<vmem>>, vector<1x128x128xbf16>
    %87 = vector.shape_cast %86 : vector<1x128x128xbf16> to vector<128x128xbf16>
    %cst_48 = arith.constant dense<0.000000e+00> : vector<32x128xf32>
    %88 = tpu.matmul %81, %87, %cst_48 {dimension_numbers = #tpu.dot_dimension_numbers<[1], [0], [0], [1], [0, 0, 1, 1], [], []>} : vector<32x128xbf16>, vector<128x128xbf16>, vector<32x128xf32> -> vector<32x128xf32>
    %89 = arith.addf %85, %88 : vector<32x128xf32>
    %c2_49 = arith.constant 2 : index
    %c0_50 = arith.constant 0 : index
    %c0_51 = arith.constant 0 : index
    %90 = vector.load %arg2[%c2_49, %c0_50, %c0_51] : memref<3x128x128xbf16, #tpu.memory_space<vmem>>, vector<1x128x128xbf16>
    %91 = vector.shape_cast %90 : vector<1x128x128xbf16> to vector<128x128xbf16>
    %cst_52 = arith.constant dense<0.000000e+00> : vector<32x128xf32>
    %92 = tpu.matmul %82, %91, %cst_52 {dimension_numbers = #tpu.dot_dimension_numbers<[1], [0], [0], [1], [0, 0, 1, 1], [], []>} : vector<32x128xbf16>, vector<128x128xbf16>, vector<32x128xf32> -> vector<32x128xf32>
    %93 = arith.addf %89, %92 : vector<32x128xf32>
    %cst_53 = arith.constant dense<0.000000e+00> : vector<128xf32>
    %94 = vector.multi_reduction <add>, %93, %cst_53 [0] : vector<32x128xf32> to vector<128xf32>
    %95 = vector.shape_cast %94 : vector<128xf32> to vector<1x128xf32>
    %96 = arith.mulf %93, %93 : vector<32x128xf32>
    %cst_54 = arith.constant dense<0.000000e+00> : vector<128xf32>
    %97 = vector.multi_reduction <add>, %96, %cst_54 [0] : vector<32x128xf32> to vector<128xf32>
    %98 = vector.shape_cast %97 : vector<128xf32> to vector<1x128xf32>
    %c0_55 = arith.constant 0 : index
    %c0_56 = arith.constant 0 : index
    %99 = vector.load %arg7[%c0_55, %c0_56] : memref<128x8xf32, #tpu.memory_space<vmem>>, vector<128x8xf32>
    %cst_57 = arith.constant dense<0.000000e+00> : vector<1x8xf32>
    %100 = tpu.matmul %95, %99, %cst_57 {dimension_numbers = #tpu.dot_dimension_numbers<[1], [0], [0], [1], [0, 0, 1, 1], [], []>} : vector<1x128xf32>, vector<128x8xf32>, vector<1x8xf32> -> vector<1x8xf32>
    %cst_58 = arith.constant 0.001953125 : f32
    %101 = vector.broadcast %cst_58 : f32 to vector<1x8xf32>
    %102 = arith.mulf %100, %101 : vector<1x8xf32>
    %cst_59 = arith.constant dense<0.000000e+00> : vector<1x8xf32>
    %103 = tpu.matmul %98, %99, %cst_59 {dimension_numbers = #tpu.dot_dimension_numbers<[1], [0], [0], [1], [0, 0, 1, 1], [], []>} : vector<1x128xf32>, vector<128x8xf32>, vector<1x8xf32> -> vector<1x8xf32>
    %cst_60 = arith.constant 0.001953125 : f32
    %104 = vector.broadcast %cst_60 : f32 to vector<1x8xf32>
    %105 = arith.mulf %103, %104 : vector<1x8xf32>
    %106 = arith.mulf %102, %102 : vector<1x8xf32>
    %107 = arith.subf %105, %106 : vector<1x8xf32>
    %c0_61 = arith.constant 0 : index
    %c0_62 = arith.constant 0 : index
    %108 = vector.load %arg5[%c0_61, %c0_62] : memref<1x8xf32, #tpu.memory_space<vmem>>, vector<1x8xf32>
    %cst_63 = arith.constant 9.99999974E-6 : f32
    %109 = vector.broadcast %cst_63 : f32 to vector<1x8xf32>
    %110 = arith.addf %107, %109 : vector<1x8xf32>
    %111 = math.rsqrt %110 : vector<1x8xf32>
    %112 = arith.mulf %108, %111 : vector<1x8xf32>
    %c0_64 = arith.constant 0 : index
    %c0_65 = arith.constant 0 : index
    %113 = vector.load %arg6[%c0_64, %c0_65] : memref<1x8xf32, #tpu.memory_space<vmem>>, vector<1x8xf32>
    %114 = arith.mulf %102, %112 : vector<1x8xf32>
    %115 = arith.subf %113, %114 : vector<1x8xf32>
    %c0_66 = arith.constant 0 : index
    %c0_67 = arith.constant 0 : index
    %116 = vector.load %arg8[%c0_66, %c0_67] : memref<8x128xf32, #tpu.memory_space<vmem>>, vector<8x128xf32>
    %cst_68 = arith.constant dense<0.000000e+00> : vector<1x128xf32>
    %117 = tpu.matmul %112, %116, %cst_68 {dimension_numbers = #tpu.dot_dimension_numbers<[1], [0], [0], [1], [0, 0, 1, 1], [], []>} : vector<1x8xf32>, vector<8x128xf32>, vector<1x128xf32> -> vector<1x128xf32>
    %c0_69 = arith.constant 0 : index
    %c0_70 = arith.constant 0 : index
    %118 = vector.load %arg8[%c0_69, %c0_70] : memref<8x128xf32, #tpu.memory_space<vmem>>, vector<8x128xf32>
    %cst_71 = arith.constant dense<0.000000e+00> : vector<1x128xf32>
    %119 = tpu.matmul %115, %118, %cst_71 {dimension_numbers = #tpu.dot_dimension_numbers<[1], [0], [0], [1], [0, 0, 1, 1], [], []>} : vector<1x8xf32>, vector<8x128xf32>, vector<1x128xf32> -> vector<1x128xf32>
    %120 = vector.broadcast %117 : vector<1x128xf32> to vector<32x128xf32>
    %121 = arith.mulf %93, %120 : vector<32x128xf32>
    %122 = vector.broadcast %119 : vector<1x128xf32> to vector<32x128xf32>
    %123 = arith.addf %121, %122 : vector<32x128xf32>
    %124 = arith.addf %123, %21 : vector<32x128xf32>
    %cst_72 = arith.constant 0.000000e+00 : f32
    %125 = vector.broadcast %cst_72 : f32 to vector<32x128xf32>
    %126 = arith.maximumf %124, %125 : vector<32x128xf32>
    %c0_73 = arith.constant 0 : index
    %c0_74 = arith.constant 0 : index
    %127 = vector.load %arg9[%c0_73, %c0_74] : memref<32x128xf32, #tpu.memory_space<vmem>>, vector<32x128xf32>
    tpu.vector_store %arg9[%c0_73, %c0_74], %126 {strides = array<i32>} : memref<32x128xf32, #tpu.memory_space<vmem>>, vector<32x128xf32>,
    return
  }
}

</mosaic_0001>

<llo_original>
// kernel: tpu_custom_call.1
$region0: #{tpu_custom_call.1}
  #allocation0 [shape = 'u32[]', space=smem, size = 0x4, offset = 0x4, fixed_abs, tag = 'smem constant byte address 0x4 - core index']
  #allocation1 [shape = 'u32[144,128]{1,0:T(1,128)}', space=vmem, size = 0x12000, scoped, tag = 'internal scratch']
  %s0 = inlined_call_operand.vmem [shape: f32[32,128], index: 0, kind: input, shape index: {}]
  %s1 = inlined_call_operand.hbm [shape: bf16[3,128,128], index: 1, kind: input, shape index: {}]
  %s2 = inlined_call_operand.hbm [shape: bf16[3,128,128], index: 2, kind: input, shape index: {}]
  %s3 = inlined_call_operand.vmem [shape: f32[1,8], index: 3, kind: input, shape index: {}]
  %s4 = inlined_call_operand.vmem [shape: f32[1,8], index: 4, kind: input, shape index: {}]
  %s5 = inlined_call_operand.vmem [shape: f32[1,8], index: 5, kind: input, shape index: {}]
  %s6 = inlined_call_operand.vmem [shape: f32[1,8], index: 6, kind: input, shape index: {}]
  %s7 = inlined_call_operand.vmem [shape: f32[128,8], index: 7, kind: input, shape index: {}]
  %s8 = inlined_call_operand.vmem [shape: f32[8,128], index: 8, kind: input, shape index: {}]
  %s9 = inlined_call_operand.hbm [shape: f32[32,128], index: 9, kind: output, shape index: {}]
  %s10 = sld [smem:[#allocation0]]
  $region54: #{tpu_custom_call.1} parent=0
    _
  %s12 = ssub.s32 1, %s10
  %s13 = scalar_select 0, %s12, %s10
  $region1: #{tpu_custom_call.1} parent=0
    #allocation2 [shape = 'u8[98304]{0}', space=vmem, size = 0x18000, scoped, tag = 'input window, operand 1, single buffered']
    #allocation3 [shape = 's32[1]{0}', space=sflag, size = 0x4, scoped, tag = 'scoped memory for tpu_custom_call.1']
    #allocation4 [shape = 's32[1]{0}', space=sflag, size = 0x4, scoped, tag = 'scoped memory for tpu_custom_call.1']
    #allocation5 [shape = 'u8[98304]{0}', space=vmem, size = 0x18000, scoped, tag = 'input window, operand 2, single buffered']
    #allocation6 [shape = 's32[1]{0}', space=sflag, size = 0x4, scoped, tag = 'scoped memory for tpu_custom_call.1']
    #allocation7 [shape = 'u8[16384]{0}', space=vmem, size = 0x4000, scoped, tag = 'output window, operand 0, single buffered']
    %14 = vsyncpa [#allocation3], 0
    %15 = vsyncpa [#allocation6], 0
    %16 = vsyncpa [#allocation4], 0
    // Predicated region
    $region2: #{tpu_custom_call.1} parent=1 // pred_check
      _
    $region3: #{tpu_custom_call.1} parent=1 // pred_check_branch
      %18 = sbr.rel (0) target = $region5
    $region4: #{tpu_custom_call.1} parent=1 // pred_region
      _
    $region5: #{tpu_custom_call.1} parent=1 // pred_fallthru
      _
    // Predicated region
    $region6: #{tpu_custom_call.1} parent=1 // pred_check
      _
    $region7: #{tpu_custom_call.1} parent=1 // pred_check_branch
      %20 = sbr.rel (0) target = $region9
    $region8: #{tpu_custom_call.1} parent=1 // pred_region
      %s22 = ssub.s32 3072, 3072
      %23 = vsyncadd [#allocation3], %s22
      %s24 = sshll.u32 [#allocation2], 4
      %s25 = int_to_ptr.vmem [resolvable:$true] %s24
      %30 = dma.hbm_to_vmem [thread:$0]  %s1, 3072, %s25, [#allocation3], 64, 64, 4
    $region9: #{tpu_custom_call.1} parent=1 // pred_fallthru
      _
    // Predicated region
    $region10: #{tpu_custom_call.1} parent=1 // pred_check
      _
    $region11: #{tpu_custom_call.1} parent=1 // pred_check_branch
      %32 = sbr.rel (0) target = $region13
    $region12: #{tpu_custom_call.1} parent=1 // pred_region
      %s34 = ssub.s32 3072, 3072
      %35 = vsyncadd [#allocation6], %s34
      %s36 = sshll.u32 [#allocation5], 4
      %s37 = int_to_ptr.vmem [resolvable:$true] %s36
      %42 = dma.hbm_to_vmem [thread:$0]  %s2, 3072, %s37, [#allocation6], 64, 64, 4
    $region13: #{tpu_custom_call.1} parent=1 // pred_fallthru
      _
    // Predicated region
    $region14: #{tpu_custom_call.1} parent=1 // pred_check
      _
    $region15: #{tpu_custom_call.1} parent=1 // pred_check_branch
      %44 = sbr.rel (0) target = $region17
    $region16: #{tpu_custom_call.1} parent=1 // pred_region
      _
    $region17: #{tpu_custom_call.1} parent=1 // pred_fallthru
      _
    // Predicated region
    $region18: #{tpu_custom_call.1} parent=1 // pred_check
      _
    $region19: #{tpu_custom_call.1} parent=1 // pred_check_branch
      %46 = sbr.rel (0) target = $region21
    $region20: #{tpu_custom_call.1} parent=1 // pred_region
      _
    $region21: #{tpu_custom_call.1} parent=1 // pred_fallthru
      _
    // Predicated region
    $region22: #{tpu_custom_call.1} parent=1 // pred_check
      _
    $region23: #{tpu_custom_call.1} parent=1 // pred_check_branch
      %48 = sbr.rel (0) target = $region25
    $region24: #{tpu_custom_call.1} parent=1 // pred_region
      _
    $region25: #{tpu_custom_call.1} parent=1 // pred_fallthru
      _
    // Predicated region
    $region26: #{tpu_custom_call.1} parent=1 // pred_check
      _
    $region27: #{tpu_custom_call.1} parent=1 // pred_check_branch
      %50 = sbr.rel (0) target = $region29
    $region28: #{tpu_custom_call.1} parent=1 // pred_region
      _
    $region29: #{tpu_custom_call.1} parent=1 // pred_fallthru
      _
    // Predicated region
    $region30: #{tpu_custom_call.1} parent=1 // pred_check
      _
    $region31: #{tpu_custom_call.1} parent=1 // pred_check_branch
      %52 = sbr.rel (0) target = $region33
    $region32: #{tpu_custom_call.1} parent=1 // pred_region
      _
    $region33: #{tpu_custom_call.1} parent=1 // pred_fallthru
      _
    // Predicated region
    $region34: #{tpu_custom_call.1} parent=1 // pred_check
      _
    $region35: #{tpu_custom_call.1} parent=1 // pred_check_branch
      %54 = sbr.rel (0) target = $region37
    $region36: #{tpu_custom_call.1} parent=1 // pred_region
      _
    $region37: #{tpu_custom_call.1} parent=1 // pred_fallthru
      _
    // Predicated region
    $region38: #{tpu_custom_call.1} parent=1 // pred_check
      _
    $region39: #{tpu_custom_call.1} parent=1 // pred_check_branch
      %56 = sbr.rel (0) target = $region41
    $region40: #{tpu_custom_call.1} parent=1 // pred_region
      %57 = dma.done [#allocation3], 3072
    $region41: #{tpu_custom_call.1} parent=1 // pred_fallthru
      _
    // Predicated region
    $region42: #{tpu_custom_call.1} parent=1 // pred_check
      _
    $region43: #{tpu_custom_call.1} parent=1 // pred_check_branch
      %59 = sbr.rel (0) target = $region45
    $region44: #{tpu_custom_call.1} parent=1 // pred_region
      %60 = dma.done [#allocation6], 3072
    $region45: #{tpu_custom_call.1} parent=1 // pred_fallthru
      _
    %v62 = vlaneseq
    %v63 = vshrl.u32 %v62, 7
    %v64 = vadd.s32 %v63, 8
    %v65 = vadd.s32 %v63, 16
    %v66 = vadd.s32 %v63, 24
    %vm67 = vcmp.lt.s32.totalorder %v63, 0
    %v68 = vsub.s32 0, %v63
    %v69 = vsel %vm67, %v68, %v63
    %v70 = vshrl.u32 %v69, 4
    %v71 = vand.u32 %v69, 15
    %v72 = vsub.s32 0, %v71
    %v73 = vsel %vm67, %v72, %v71
    %vm74 = vcmp.lt.s32.totalorder %v64, 0
    %v75 = vsub.s32 0, %v64
    %v76 = vsel %vm74, %v75, %v64
    %v77 = vshrl.u32 %v76, 4
    %v78 = vand.u32 %v76, 15
    %v79 = vsub.s32 0, %v78
    %v80 = vsel %vm74, %v79, %v78
    %vm81 = vcmp.lt.s32.totalorder %v65, 0
    %v82 = vsub.s32 0, %v65
    %v83 = vsel %vm81, %v82, %v65
    %v84 = vshrl.u32 %v83, 4
    %v85 = vand.u32 %v83, 15
    %v86 = vsub.s32 0, %v85
    %v87 = vsel %vm81, %v86, %v85
    %vm88 = vcmp.lt.s32.totalorder %v66, 0
    %v89 = vsub.s32 0, %v66
    %v90 = vsel %vm88, %v89, %v66
    %v91 = vshrl.u32 %v90, 4
    %v92 = vand.u32 %v90, 15
    %v93 = vsub.s32 0, %v92
    %v94 = vsel %vm88, %v93, %v92
    %vm95 = vcmp.ne.s32.totalorder %v73, 0
    %vm96 = vcmp.ne.s32.totalorder %v80, 0
    %vm97 = vcmp.ne.s32.totalorder %v87, 0
    %vm98 = vcmp.ne.s32.totalorder %v94, 0
    %vm99 = vcmp.lt.s32.totalorder %v73, 0
    %vm100 = vcmp.lt.s32.totalorder %v80, 0
    %vm101 = vcmp.lt.s32.totalorder %v87, 0
    %vm102 = vcmp.lt.s32.totalorder %v94, 0
    %vm103 = vmand %vm99, %vm95
    %vm104 = vmand %vm100, %vm96
    %vm105 = vmand %vm101, %vm97
    %vm106 = vmand %vm102, %vm98
    %v107 = vadd.s32 %v73, 16
    %v108 = vadd.s32 %v80, 16
    %v109 = vadd.s32 %v87, 16
    %v110 = vadd.s32 %v94, 16
    %v111 = vsel %vm103, %v107, %v73
    %v112 = vsel %vm104, %v108, %v80
    %v113 = vsel %vm105, %v109, %v87
    %v114 = vsel %vm106, %v110, %v94
    %vm115 = vcmp.eq.s32.totalorder %v111, 0
    %vm116 = vcmp.eq.s32.totalorder %v112, 0
    %vm117 = vcmp.eq.s32.totalorder %v113, 0
    %vm118 = vcmp.eq.s32.totalorder %v114, 0
    %vm119 = vcmp.eq.s32.totalorder %v111, 15
    %vm120 = vcmp.eq.s32.totalorder %v112, 15
    %vm121 = vcmp.eq.s32.totalorder %v113, 15
    %vm122 = vcmp.eq.s32.totalorder %v114, 15
    %v123 = vld [vmem:[%s0] sm:$0xff]
    %v124 = vld [vmem:[%s0 + $0x8] sm:$0xff]
    %v125 = vld [vmem:[%s0 + $0x10] sm:$0xff]
    %v126 = vld [vmem:[%s0 + $0x18] sm:$0xff]
    %v127 = vrot.slane %v123, 7
    %v128 = vrot.slane %v124, 7
    %v129 = vrot.slane %v125, 7
    %v130 = vrot.slane %v126, 7
    %vm131 = vcmp.lt.s32.totalorder %v63, 1
    %v132 = vsel %vm131, %v129, %v130
    %v133 = vsel %vm131, %v128, %v129
    %v134 = vsel %vm131, %v127, %v128
    %v135 = vsel %vm131, %v130, %v127
    %v136 = vsel %vm115, 0.0, %v135
    %v137 = vsel %vm116, 0.0, %v134
    %v138 = vsel %vm117, 0.0, %v133
    %v139 = vsel %vm118, 0.0, %v132
    %v140 = vrot.slane %v123, 1
    %v141 = vrot.slane %v124, 1
    %v142 = vrot.slane %v125, 1
    %v143 = vrot.slane %v126, 1
    %vm144 = vcmp.lt.s32.totalorder %v63, 7
    %v145 = vsel %vm144, %v142, %v143
    %v146 = vsel %vm144, %v141, %v142
    %v147 = vsel %vm144, %v140, %v141
    %v148 = vsel %vm144, %v143, %v140
    %v149 = vsel %vm119, 0.0, %v147
    %v150 = vsel %vm120, 0.0, %v146
    %v151 = vsel %vm121, 0.0, %v145
    %v152 = vsel %vm122, 0.0, %v148
    %v153 = vpack.c.bf16 %v137, %v136
    %v154 = vpack.c.bf16 %v139, %v138
    %v155 = vpack.c.bf16 %v124, %v123
    %v156 = vpack.c.bf16 %v126, %v125
    %v157 = vpack.c.bf16 %v150, %v149
    %v158 = vpack.c.bf16 %v152, %v151
    %v159 = vld [vmem:[#allocation2] sm:$0xf]
    %v160 = vld [vmem:[#allocation2 + $0x4] sm:$0xf]
    %v161 = vld [vmem:[#allocation2 + $0x8] sm:$0xf]
    %v162 = vld [vmem:[#allocation2 + $0xc] sm:$0xf]
    %v163 = vld [vmem:[#allocation2 + $0x10] sm:$0xf]
    %v164 = vld [vmem:[#allocation2 + $0x14] sm:$0xf]
    %v165 = vld [vmem:[#allocation2 + $0x18] sm:$0xf]
    %v166 = vld [vmem:[#allocation2 + $0x1c] sm:$0xf]
    %v167 = vld [vmem:[#allocation2 + $0x20] sm:$0xf]
    %v168 = vld [vmem:[#allocation2 + $0x24] sm:$0xf]
    %v169 = vld [vmem:[#allocation2 + $0x28] sm:$0xf]
    %v170 = vld [vmem:[#allocation2 + $0x2c] sm:$0xf]
    %v171 = vld [vmem:[#allocation2 + $0x30] sm:$0xf]
    %v172 = vld [vmem:[#allocation2 + $0x34] sm:$0xf]
    %v173 = vld [vmem:[#allocation2 + $0x38] sm:$0xf]
    %v174 = vld [vmem:[#allocation2 + $0x3c] sm:$0xf]
    %s175 = scalar_lea.vmem [#allocation2], 64
    %v176 = vld [vmem:[%s175] sm:$0xf]
    %v177 = vld [vmem:[%s175 + $0x4] sm:$0xf]
    %v178 = vld [vmem:[%s175 + $0x8] sm:$0xf]
    %v179 = vld [vmem:[%s175 + $0xc] sm:$0xf]
    %v180 = vld [vmem:[%s175 + $0x10] sm:$0xf]
    %v181 = vld [vmem:[%s175 + $0x14] sm:$0xf]
    %v182 = vld [vmem:[%s175 + $0x18] sm:$0xf]
    %v183 = vld [vmem:[%s175 + $0x1c] sm:$0xf]
    %v184 = vld [vmem:[%s175 + $0x20] sm:$0xf]
    %v185 = vld [vmem:[%s175 + $0x24] sm:$0xf]
    %v186 = vld [vmem:[%s175 + $0x28] sm:$0xf]
    %v187 = vld [vmem:[%s175 + $0x2c] sm:$0xf]
    %v188 = vld [vmem:[%s175 + $0x30] sm:$0xf]
    %v189 = vld [vmem:[%s175 + $0x34] sm:$0xf]
    %v190 = vld [vmem:[%s175 + $0x38] sm:$0xf]
    %v191 = vld [vmem:[%s175 + $0x3c] sm:$0xf]
    %v208 = vunpack.c.l.b16 %v176
    %v209 = vunpack.c.l.b16 %v177
    %v210 = vunpack.c.l.b16 %v178
    %v211 = vunpack.c.l.b16 %v179
    %v212 = vunpack.c.l.b16 %v180
    %v213 = vunpack.c.l.b16 %v181
    %v214 = vunpack.c.l.b16 %v182
    %v215 = vunpack.c.l.b16 %v183
    %v216 = vunpack.c.l.b16 %v184
    %v217 = vunpack.c.l.b16 %v185
    %v218 = vunpack.c.l.b16 %v186
    %v219 = vunpack.c.l.b16 %v187
    %v220 = vunpack.c.l.b16 %v188
    %v221 = vunpack.c.l.b16 %v189
    %v222 = vunpack.c.l.b16 %v190
    %v223 = vunpack.c.l.b16 %v191
    %v224 = vpack.c.b16 %v209, %v208
    %v225 = vpack.c.b16 %v211, %v210
    %v226 = vpack.c.b16 %v213, %v212
    %v227 = vpack.c.b16 %v215, %v214
    %v228 = vpack.c.b16 %v217, %v216
    %v229 = vpack.c.b16 %v219, %v218
    %v230 = vpack.c.b16 %v221, %v220
    %v231 = vpack.c.b16 %v223, %v222
    %240 = vmatprep.subr.bf16.mxu0 0
    %241 = vmatpush1.bf16.msra.mxu0 %v231
    %242 = vmatprep.subr.bf16.mxu0 0
    %243 = vmatpush1.bf16.msra.mxu0 %v230
    %244 = vmatprep.subr.bf16.mxu0 0
    %245 = vmatpush1.bf16.msra.mxu0 %v229
    %246 = vmatprep.subr.bf16.mxu0 0
    %247 = vmatpush1.bf16.msra.mxu0 %v228
    %248 = vmatprep.subr.bf16.mxu0 0
    %249 = vmatpush1.bf16.msra.mxu0 %v227
    %250 = vmatprep.subr.bf16.mxu0 0
    %251 = vmatpush1.bf16.msra.mxu0 %v226
    %252 = vmatprep.subr.bf16.mxu0 0
    %253 = vmatpush1.bf16.msra.mxu0 %v225
    %254 = vmatprep.subr.bf16.mxu0 0
    %255 = vmatpush1.bf16.msra.mxu0 %v224
    %256 = vmatprep.subr.bf16.mxu0 0
    %257 = vmatpush2.bf16.msra.mxu0 0
    %258 = vmatprep.subr.bf16.mxu0 0
    %259 = vmatpush2.bf16.msra.mxu0 0
    %260 = vmatprep.subr.bf16.mxu0 0
    %261 = vmatpush2.bf16.msra.mxu0 0
    %262 = vmatprep.subr.bf16.mxu0 0
    %263 = vmatpush2.bf16.msra.mxu0 0
    %264 = vmatprep.subr.bf16.mxu0 0
    %265 = vmatpush2.bf16.msra.mxu0 0
    %266 = vmatprep.subr.bf16.mxu0 0
    %267 = vmatpush2.bf16.msra.mxu0 0
    %268 = vmatprep.subr.bf16.mxu0 0
    %269 = vmatpush2.bf16.msra.mxu0 0
    %270 = vmatprep.subr.bf16.mxu0 0
    %271 = vmatpush2.bf16.msra.mxu0 0
    %272 = vmatprep.mubr.bf16.mxu0 0
    %273 = vmatmul.mubr.bf16.gmra.mxu0 %v155
    %v274 = vpop.f32.mrf.mxu0
    %v275 = vadd.f32 0.0, %v274
    %v276 = vpop.f32.mrf.mxu0
    %v277 = vpop.f32.mrf.mxu0
    %v278 = vadd.f32 0.0, %v277
    %v279 = vpop.f32.mrf.mxu0
    %280 = vmatprep.mubr.bf16.mxu0 0
    %281 = vmatmul.mubr.bf16.gmra.mxu0 %v156
    %v282 = vpop.f32.mrf.mxu0
    %v283 = vadd.f32 0.0, %v282
    %v284 = vpop.f32.mrf.mxu0
    %v285 = vpop.f32.mrf.mxu0
    %v286 = vadd.f32 0.0, %v285
    %v287 = vpop.f32.mrf.mxu0
    %288 = vdwg.mxu0
    %v305 = vunpack.c.l.b16 %v159
    %v306 = vunpack.c.l.b16 %v160
    %v307 = vunpack.c.l.b16 %v161
    %v308 = vunpack.c.l.b16 %v162
    %v309 = vunpack.c.l.b16 %v163
    %v310 = vunpack.c.l.b16 %v164
    %v311 = vunpack.c.l.b16 %v165
    %v312 = vunpack.c.l.b16 %v166
    %v313 = vunpack.c.l.b16 %v167
    %v314 = vunpack.c.l.b16 %v168
    %v315 = vunpack.c.l.b16 %v169
    %v316 = vunpack.c.l.b16 %v170
    %v317 = vunpack.c.l.b16 %v171
    %v318 = vunpack.c.l.b16 %v172
    %v319 = vunpack.c.l.b16 %v173
    %v320 = vunpack.c.l.b16 %v174
    %v321 = vpack.c.b16 %v306, %v305
    %v322 = vpack.c.b16 %v308, %v307
    %v323 = vpack.c.b16 %v310, %v309
    %v324 = vpack.c.b16 %v312, %v311
    %v325 = vpack.c.b16 %v314, %v313
    %v326 = vpack.c.b16 %v316, %v315
    %v327 = vpack.c.b16 %v318, %v317
    %v328 = vpack.c.b16 %v320, %v319
    %337 = vmatprep.subr.bf16.mxu0 0
    %338 = vmatpush1.bf16.msra.mxu0 %v328
    %339 = vmatprep.subr.bf16.mxu0 0
    %340 = vmatpush1.bf16.msra.mxu0 %v327
    %341 = vmatprep.subr.bf16.mxu0 0
    %342 = vmatpush1.bf16.msra.mxu0 %v326
    %343 = vmatprep.subr.bf16.mxu0 0
    %344 = vmatpush1.bf16.msra.mxu0 %v325
    %345 = vmatprep.subr.bf16.mxu0 0
    %346 = vmatpush1.bf16.msra.mxu0 %v324
    %347 = vmatprep.subr.bf16.mxu0 0
    %348 = vmatpush1.bf16.msra.mxu0 %v323
    %349 = vmatprep.subr.bf16.mxu0 0
    %350 = vmatpush1.bf16.msra.mxu0 %v322
    %351 = vmatprep.subr.bf16.mxu0 0
    %352 = vmatpush1.bf16.msra.mxu0 %v321
    %353 = vmatprep.subr.bf16.mxu0 0
    %354 = vmatpush2.bf16.msra.mxu0 0
    %355 = vmatprep.subr.bf16.mxu0 0
    %356 = vmatpush2.bf16.msra.mxu0 0
    %357 = vmatprep.subr.bf16.mxu0 0
    %358 = vmatpush2.bf16.msra.mxu0 0
    %359 = vmatprep.subr.bf16.mxu0 0
    %360 = vmatpush2.bf16.msra.mxu0 0
    %361 = vmatprep.subr.bf16.mxu0 0
    %362 = vmatpush2.bf16.msra.mxu0 0
    %363 = vmatprep.subr.bf16.mxu0 0
    %364 = vmatpush2.bf16.msra.mxu0 0
    %365 = vmatprep.subr.bf16.mxu0 0
    %366 = vmatpush2.bf16.msra.mxu0 0
    %367 = vmatprep.subr.bf16.mxu0 0
    %368 = vmatpush2.bf16.msra.mxu0 0
    %369 = vmatprep.mubr.bf16.mxu0 0
    %370 = vmatmul.mubr.bf16.gmra.mxu0 %v153
    %v371 = vpop.f32.mrf.mxu0
    %v372 = vadd.f32 %v275, %v371
    %v373 = vpop.f32.mrf.mxu0
    %v374 = vpop.f32.mrf.mxu0
    %v375 = vadd.f32 %v278, %v374
    %v376 = vpop.f32.mrf.mxu0
    %377 = vmatprep.mubr.bf16.mxu0 0
    %378 = vmatmul.mubr.bf16.gmra.mxu0 %v154
    %v379 = vpop.f32.mrf.mxu0
    %v380 = vadd.f32 %v283, %v379
    %v381 = vpop.f32.mrf.mxu0
    %v382 = vpop.f32.mrf.mxu0
    %v383 = vadd.f32 %v286, %v382
    %v384 = vpop.f32.mrf.mxu0
    %385 = vdwg.mxu0
    %s386 = scalar_lea.vmem [#allocation2], 128
    %v387 = vld [vmem:[%s386] sm:$0xf]
    %v388 = vld [vmem:[%s386 + $0x4] sm:$0xf]
    %v389 = vld [vmem:[%s386 + $0x8] sm:$0xf]
    %v390 = vld [vmem:[%s386 + $0xc] sm:$0xf]
    %v391 = vld [vmem:[%s386 + $0x10] sm:$0xf]
    %v392 = vld [vmem:[%s386 + $0x14] sm:$0xf]
    %v393 = vld [vmem:[%s386 + $0x18] sm:$0xf]
    %v394 = vld [vmem:[%s386 + $0x1c] sm:$0xf]
    %v395 = vld [vmem:[%s386 + $0x20] sm:$0xf]
    %v396 = vld [vmem:[%s386 + $0x24] sm:$0xf]
    %v397 = vld [vmem:[%s386 + $0x28] sm:$0xf]
    %v398 = vld [vmem:[%s386 + $0x2c] sm:$0xf]
    %v399 = vld [vmem:[%s386 + $0x30] sm:$0xf]
    %v400 = vld [vmem:[%s386 + $0x34] sm:$0xf]
    %v401 = vld [vmem:[%s386 + $0x38] sm:$0xf]
    %v402 = vld [vmem:[%s386 + $0x3c] sm:$0xf]
    %v419 = vunpack.c.l.b16 %v387
    %v420 = vunpack.c.l.b16 %v388
    %v421 = vunpack.c.l.b16 %v389
    %v422 = vunpack.c.l.b16 %v390
    %v423 = vunpack.c.l.b16 %v391
    %v424 = vunpack.c.l.b16 %v392
    %v425 = vunpack.c.l.b16 %v393
    %v426 = vunpack.c.l.b16 %v394
    %v427 = vunpack.c.l.b16 %v395
    %v428 = vunpack.c.l.b16 %v396
    %v429 = vunpack.c.l.b16 %v397
    %v430 = vunpack.c.l.b16 %v398
    %v431 = vunpack.c.l.b16 %v399
    %v432 = vunpack.c.l.b16 %v400
    %v433 = vunpack.c.l.b16 %v401
    %v434 = vunpack.c.l.b16 %v402
    %v435 = vpack.c.b16 %v420, %v419
    %v436 = vpack.c.b16 %v422, %v421
    %v437 = vpack.c.b16 %v424, %v423
    %v438 = vpack.c.b16 %v426, %v425
    %v439 = vpack.c.b16 %v428, %v427
    %v440 = vpack.c.b16 %v430, %v429
    %v441 = vpack.c.b16 %v432, %v431
    %v442 = vpack.c.b16 %v434, %v433
    %451 = vmatprep.subr.bf16.mxu0 0
    %452 = vmatpush1.bf16.msra.mxu0 %v442
    %453 = vmatprep.subr.bf16.mxu0 0
    %454 = vmatpush1.bf16.msra.mxu0 %v441
    %455 = vmatprep.subr.bf16.mxu0 0
    %456 = vmatpush1.bf16.msra.mxu0 %v440
    %457 = vmatprep.subr.bf16.mxu0 0
    %458 = vmatpush1.bf16.msra.mxu0 %v439
    %459 = vmatprep.subr.bf16.mxu0 0
    %460 = vmatpush1.bf16.msra.mxu0 %v438
    %461 = vmatprep.subr.bf16.mxu0 0
    %462 = vmatpush1.bf16.msra.mxu0 %v437
    %463 = vmatprep.subr.bf16.mxu0 0
    %464 = vmatpush1.bf16.msra.mxu0 %v436
    %465 = vmatprep.subr.bf16.mxu0 0
    %466 = vmatpush1.bf16.msra.mxu0 %v435
    %467 = vmatprep.subr.bf16.mxu0 0
    %468 = vmatpush2.bf16.msra.mxu0 0
    %469 = vmatprep.subr.bf16.mxu0 0
    %470 = vmatpush2.bf16.msra.mxu0 0
    %471 = vmatprep.subr.bf16.mxu0 0
    %472 = vmatpush2.bf16.msra.mxu0 0
    %473 = vmatprep.subr.bf16.mxu0 0
    %474 = vmatpush2.bf16.msra.mxu0 0
    %475 = vmatprep.subr.bf16.mxu0 0
    %476 = vmatpush2.bf16.msra.mxu0 0
    %477 = vmatprep.subr.bf16.mxu0 0
    %478 = vmatpush2.bf16.msra.mxu0 0
    %479 = vmatprep.subr.bf16.mxu0 0
    %480 = vmatpush2.bf16.msra.mxu0 0
    %481 = vmatprep.subr.bf16.mxu0 0
    %482 = vmatpush2.bf16.msra.mxu0 0
    %483 = vmatprep.mubr.bf16.mxu0 0
    %484 = vmatmul.mubr.bf16.gmra.mxu0 %v157
    %v485 = vpop.f32.mrf.mxu0
    %v486 = vadd.f32 0.0, %v485
    %v487 = vpop.f32.mrf.mxu0
    %v488 = vpop.f32.mrf.mxu0
    %v489 = vadd.f32 0.0, %v488
    %v490 = vpop.f32.mrf.mxu0
    %491 = vmatprep.mubr.bf16.mxu0 0
    %492 = vmatmul.mubr.bf16.gmra.mxu0 %v158
    %v493 = vpop.f32.mrf.mxu0
    %v494 = vadd.f32 0.0, %v493
    %v495 = vpop.f32.mrf.mxu0
    %v496 = vpop.f32.mrf.mxu0
    %v497 = vadd.f32 0.0, %v496
    %v498 = vpop.f32.mrf.mxu0
    %499 = vdwg.mxu0
    %v500 = vadd.f32 %v372, %v486
    %v501 = vadd.f32 %v375, %v489
    %v502 = vadd.f32 %v380, %v494
    %v503 = vadd.f32 %v383, %v497
    %v504 = vadd.f32 %v500, %v501
    %v505 = vadd.f32 %v504, %v502
    %v506 = vadd.f32 %v505, %v503
    %v507 = vrot.slane %v506, 4
    %v508 = vadd.f32 %v506, %v507
    %v509 = vrot.slane %v508, 2
    %v510 = vadd.f32 %v508, %v509
    %v511 = vrot.slane %v510, 1
    %v512 = vadd.f32 %v510, %v511
    %v513 = vmul.f32 %v500, %v500
    %v514 = vmul.f32 %v501, %v501
    %v515 = vmul.f32 %v502, %v502
    %v516 = vmul.f32 %v503, %v503
    %v517 = vadd.f32 %v513, %v514
    %v518 = vadd.f32 %v517, %v515
    %v519 = vadd.f32 %v518, %v516
    %v520 = vrot.slane %v519, 4
    %v521 = vadd.f32 %v519, %v520
    %v522 = vrot.slane %v521, 2
    %v523 = vadd.f32 %v521, %v522
    %v524 = vrot.slane %v523, 1
    %v525 = vadd.f32 %v523, %v524
    %v526 = vld [vmem:[%s7] sm:$0xff]
    %v527 = vld [vmem:[%s7 + $0x8] sm:$0xff]
    %v528 = vld [vmem:[%s7 + $0x10] sm:$0xff]
    %v529 = vld [vmem:[%s7 + $0x18] sm:$0xff]
    %v530 = vld [vmem:[%s7 + $0x20] sm:$0xff]
    %v531 = vld [vmem:[%s7 + $0x28] sm:$0xff]
    %v532 = vld [vmem:[%s7 + $0x30] sm:$0xff]
    %v533 = vld [vmem:[%s7 + $0x38] sm:$0xff]
    %v534 = vld [vmem:[%s7 + $0x40] sm:$0xff]
    %v535 = vld [vmem:[%s7 + $0x48] sm:$0xff]
    %v536 = vld [vmem:[%s7 + $0x50] sm:$0xff]
    %v537 = vld [vmem:[%s7 + $0x58] sm:$0xff]
    %v538 = vld [vmem:[%s7 + $0x60] sm:$0xff]
    %v539 = vld [vmem:[%s7 + $0x68] sm:$0xff]
    %v540 = vld [vmem:[%s7 + $0x70] sm:$0xff]
    %v541 = vld [vmem:[%s7 + $0x78] sm:$0xff]
    %542 = vmatprep.subr.mxu0 0.0
    %543 = vmatpush1.msra.mxu0 %v541
    %544 = vmatprep.subr.mxu0 0.0
    %545 = vmatpush1.msra.mxu0 %v540
    %546 = vmatprep.subr.mxu0 0.0
    %547 = vmatpush1.msra.mxu0 %v539
    %548 = vmatprep.subr.mxu0 0.0
    %549 = vmatpush1.msra.mxu0 %v538
    %550 = vmatprep.subr.mxu0 0.0
    %551 = vmatpush1.msra.mxu0 %v537
    %552 = vmatprep.subr.mxu0 0.0
    %553 = vmatpush1.msra.mxu0 %v536
    %554 = vmatprep.subr.mxu0 0.0
    %555 = vmatpush1.msra.mxu0 %v535
    %556 = vmatprep.subr.mxu0 0.0
    %557 = vmatpush1.msra.mxu0 %v534
    %558 = vmatprep.subr.mxu0 0.0
    %559 = vmatpush1.msra.mxu0 %v533
    %560 = vmatprep.subr.mxu0 0.0
    %561 = vmatpush1.msra.mxu0 %v532
    %562 = vmatprep.subr.mxu0 0.0
    %563 = vmatpush1.msra.mxu0 %v531
    %564 = vmatprep.subr.mxu0 0.0
    %565 = vmatpush1.msra.mxu0 %v530
    %566 = vmatprep.subr.mxu0 0.0
    %567 = vmatpush1.msra.mxu0 %v529
    %568 = vmatprep.subr.mxu0 0.0
    %569 = vmatpush1.msra.mxu0 %v528
    %570 = vmatprep.subr.mxu0 0.0
    %571 = vmatpush1.msra.mxu0 %v527
    %572 = vmatprep.subr.mxu0 0.0
    %573 = vmatpush1.msra.mxu0 %v526
    %574 = vmatprep.subr.mxu0 0.0
    %575 = vmatpush2.msra.mxu0 0.0
    %576 = vmatprep.subr.mxu0 0.0
    %577 = vmatpush2.msra.mxu0 0.0
    %578 = vmatprep.subr.mxu0 0.0
    %579 = vmatpush2.msra.mxu0 0.0
    %580 = vmatprep.subr.mxu0 0.0
    %581 = vmatpush2.msra.mxu0 0.0
    %582 = vmatprep.subr.mxu0 0.0
    %583 = vmatpush2.msra.mxu0 0.0
    %584 = vmatprep.subr.mxu0 0.0
    %585 = vmatpush2.msra.mxu0 0.0
    %586 = vmatprep.subr.mxu0 0.0
    %587 = vmatpush2.msra.mxu0 0.0
    %588 = vmatprep.subr.mxu0 0.0
    %589 = vmatpush2.msra.mxu0 0.0
    %590 = vmatprep.subr.mxu0 0.0
    %591 = vmatpush2.msra.mxu0 0.0
    %592 = vmatprep.subr.mxu0 0.0
    %593 = vmatpush2.msra.mxu0 0.0
    %594 = vmatprep.subr.mxu0 0.0
    %595 = vmatpush2.msra.mxu0 0.0
    %596 = vmatprep.subr.mxu0 0.0
    %597 = vmatpush2.msra.mxu0 0.0
    %598 = vmatprep.subr.mxu0 0.0
    %599 = vmatpush2.msra.mxu0 0.0
    %600 = vmatprep.subr.mxu0 0.0
    %601 = vmatpush2.msra.mxu0 0.0
    %602 = vmatprep.subr.mxu0 0.0
    %603 = vmatpush2.msra.mxu0 0.0
    %604 = vmatprep.subr.mxu0 0.0
    %605 = vmatpush2.msra.mxu0 0.0
    %606 = vmatprep.mubr.f32.mxu0 0.0
    %607 = vmatmul.mubr.f32.gmra.mxu0 %v512
    %v608 = vpop.f32.mrf.mxu0
    %v609 = vadd.f32 0.0, %v608
    %v610 = vpop.f32.mrf.mxu0
    %611 = vdwg.mxu0
    %v612 = vmul.f32 %v609, 0.001953125
    %613 = vmatprep.subr.mxu0 0.0
    %614 = vmatpush1.msra.mxu0 %v541
    %615 = vmatprep.subr.mxu0 0.0
    %616 = vmatpush1.msra.mxu0 %v540
    %617 = vmatprep.subr.mxu0 0.0
    %618 = vmatpush1.msra.mxu0 %v539
    %619 = vmatprep.subr.mxu0 0.0
    %620 = vmatpush1.msra.mxu0 %v538
    %621 = vmatprep.subr.mxu0 0.0
    %622 = vmatpush1.msra.mxu0 %v537
    %623 = vmatprep.subr.mxu0 0.0
    %624 = vmatpush1.msra.mxu0 %v536
    %625 = vmatprep.subr.mxu0 0.0
    %626 = vmatpush1.msra.mxu0 %v535
    %627 = vmatprep.subr.mxu0 0.0
    %628 = vmatpush1.msra.mxu0 %v534
    %629 = vmatprep.subr.mxu0 0.0
    %630 = vmatpush1.msra.mxu0 %v533
    %631 = vmatprep.subr.mxu0 0.0
    %632 = vmatpush1.msra.mxu0 %v532
    %633 = vmatprep.subr.mxu0 0.0
    %634 = vmatpush1.msra.mxu0 %v531
    %635 = vmatprep.subr.mxu0 0.0
    %636 = vmatpush1.msra.mxu0 %v530
    %637 = vmatprep.subr.mxu0 0.0
    %638 = vmatpush1.msra.mxu0 %v529
    %639 = vmatprep.subr.mxu0 0.0
    %640 = vmatpush1.msra.mxu0 %v528
    %641 = vmatprep.subr.mxu0 0.0
    %642 = vmatpush1.msra.mxu0 %v527
    %643 = vmatprep.subr.mxu0 0.0
    %644 = vmatpush1.msra.mxu0 %v526
    %645 = vmatprep.subr.mxu0 0.0
    %646 = vmatpush2.msra.mxu0 0.0
    %647 = vmatprep.subr.mxu0 0.0
    %648 = vmatpush2.msra.mxu0 0.0
    %649 = vmatprep.subr.mxu0 0.0
    %650 = vmatpush2.msra.mxu0 0.0
    %651 = vmatprep.subr.mxu0 0.0
    %652 = vmatpush2.msra.mxu0 0.0
    %653 = vmatprep.subr.mxu0 0.0
    %654 = vmatpush2.msra.mxu0 0.0
    %655 = vmatprep.subr.mxu0 0.0
    %656 = vmatpush2.msra.mxu0 0.0
    %657 = vmatprep.subr.mxu0 0.0
    %658 = vmatpush2.msra.mxu0 0.0
    %659 = vmatprep.subr.mxu0 0.0
    %660 = vmatpush2.msra.mxu0 0.0
    %661 = vmatprep.subr.mxu0 0.0
    %662 = vmatpush2.msra.mxu0 0.0
    %663 = vmatprep.subr.mxu0 0.0
    %664 = vmatpush2.msra.mxu0 0.0
    %665 = vmatprep.subr.mxu0 0.0
    %666 = vmatpush2.msra.mxu0 0.0
    %667 = vmatprep.subr.mxu0 0.0
    %668 = vmatpush2.msra.mxu0 0.0
    %669 = vmatprep.subr.mxu0 0.0
    %670 = vmatpush2.msra.mxu0 0.0
    %671 = vmatprep.subr.mxu0 0.0
    %672 = vmatpush2.msra.mxu0 0.0
    %673 = vmatprep.subr.mxu0 0.0
    %674 = vmatpush2.msra.mxu0 0.0
    %675 = vmatprep.subr.mxu0 0.0
    %676 = vmatpush2.msra.mxu0 0.0
    %677 = vmatprep.mubr.f32.mxu0 0.0
    %678 = vmatmul.mubr.f32.gmra.mxu0 %v525
    %v679 = vpop.f32.mrf.mxu0
    %v680 = vadd.f32 0.0, %v679
    %v681 = vpop.f32.mrf.mxu0
    %682 = vdwg.mxu0
    %v683 = vmul.f32 %v680, 0.001953125
    %v684 = vmul.f32 %v612, %v612
    %v685 = vsub.f32 %v683, %v684
    %v686 = vld [vmem:[%s3] sm:$0x1]
    %v687 = vadd.f32 %v685, 1e-05
    %v688 = vrsqrt.pop %v687
    %v689 = vmul.f32 %v686, %v688
    %v690 = vld [vmem:[%s4] sm:$0x1]
    %v691 = vmul.f32 %v612, %v689
    %v692 = vsub.f32 %v690, %v691
    %v693 = vld [vmem:[%s8] sm:$0xff]
    %vm694 = vcmask 64512
    %v696 = vsel %vm694, %v689, 0
    %698 = vmatprep.subr.mxu0 0.0
    %699 = vmatpush1.msra.mxu0 0.0
    %700 = vmatprep.subr.mxu0 0.0
    %701 = vmatpush1.msra.mxu0 0.0
    %702 = vmatprep.subr.mxu0 0.0
    %703 = vmatpush1.msra.mxu0 0.0
    %704 = vmatprep.subr.mxu0 0.0
    %705 = vmatpush1.msra.mxu0 0.0
    %706 = vmatprep.subr.mxu0 0.0
    %707 = vmatpush1.msra.mxu0 0.0
    %708 = vmatprep.subr.mxu0 0.0
    %709 = vmatpush1.msra.mxu0 0.0
    %710 = vmatprep.subr.mxu0 0.0
    %711 = vmatpush1.msra.mxu0 0.0
    %712 = vmatprep.subr.mxu0 0.0
    %713 = vmatpush1.msra.mxu0 0.0
    %714 = vmatprep.subr.mxu0 0.0
    %715 = vmatpush1.msra.mxu0 0.0
    %716 = vmatprep.subr.mxu0 0.0
    %717 = vmatpush1.msra.mxu0 0.0
    %718 = vmatprep.subr.mxu0 0.0
    %719 = vmatpush1.msra.mxu0 0.0
    %720 = vmatprep.subr.mxu0 0.0
    %721 = vmatpush1.msra.mxu0 0.0
    %722 = vmatprep.subr.mxu0 0.0
    %723 = vmatpush1.msra.mxu0 0.0
    %724 = vmatprep.subr.mxu0 0.0
    %725 = vmatpush1.msra.mxu0 0.0
    %726 = vmatprep.subr.mxu0 0.0
    %727 = vmatpush1.msra.mxu0 0.0
    %728 = vmatprep.subr.mxu0 0.0
    %729 = vmatpush1.msra.mxu0 %v693
    %730 = vmatprep.subr.mxu0 0.0
    %731 = vmatpush2.msra.mxu0 0.0
    %732 = vmatprep.subr.mxu0 0.0
    %733 = vmatpush2.msra.mxu0 0.0
    %734 = vmatprep.subr.mxu0 0.0
    %735 = vmatpush2.msra.mxu0 0.0
    %736 = vmatprep.subr.mxu0 0.0
    %737 = vmatpush2.msra.mxu0 0.0
    %738 = vmatprep.subr.mxu0 0.0
    %739 = vmatpush2.msra.mxu0 0.0
    %740 = vmatprep.subr.mxu0 0.0
    %741 = vmatpush2.msra.mxu0 0.0
    %742 = vmatprep.subr.mxu0 0.0
    %743 = vmatpush2.msra.mxu0 0.0
    %744 = vmatprep.subr.mxu0 0.0
    %745 = vmatpush2.msra.mxu0 0.0
    %746 = vmatprep.subr.mxu0 0.0
    %747 = vmatpush2.msra.mxu0 0.0
    %748 = vmatprep.subr.mxu0 0.0
    %749 = vmatpush2.msra.mxu0 0.0
    %750 = vmatprep.subr.mxu0 0.0
    %751 = vmatpush2.msra.mxu0 0.0
    %752 = vmatprep.subr.mxu0 0.0
    %753 = vmatpush2.msra.mxu0 0.0
    %754 = vmatprep.subr.mxu0 0.0
    %755 = vmatpush2.msra.mxu0 0.0
    %756 = vmatprep.subr.mxu0 0.0
    %757 = vmatpush2.msra.mxu0 0.0
    %758 = vmatprep.subr.mxu0 0.0
    %759 = vmatpush2.msra.mxu0 0.0
    %760 = vmatprep.subr.mxu0 0.0
    %761 = vmatpush2.msra.mxu0 0.0
    %762 = vmatprep.mubr.f32.mxu0 0.0
    %763 = vmatmul.mubr.f32.gmra.mxu0 %v696
    %v764 = vpop.f32.mrf.mxu0
    %v765 = vadd.f32 0.0, %v764
    %v766 = vpop.f32.mrf.mxu0
    %767 = vdwg.mxu0
    %v769 = vsel %vm694, %v692, 0
    %771 = vmatprep.subr.mxu0 0.0
    %772 = vmatpush1.msra.mxu0 0.0
    %773 = vmatprep.subr.mxu0 0.0
    %774 = vmatpush1.msra.mxu0 0.0
    %775 = vmatprep.subr.mxu0 0.0
    %776 = vmatpush1.msra.mxu0 0.0
    %777 = vmatprep.subr.mxu0 0.0
    %778 = vmatpush1.msra.mxu0 0.0
    %779 = vmatprep.subr.mxu0 0.0
    %780 = vmatpush1.msra.mxu0 0.0
    %781 = vmatprep.subr.mxu0 0.0
    %782 = vmatpush1.msra.mxu0 0.0
    %783 = vmatprep.subr.mxu0 0.0
    %784 = vmatpush1.msra.mxu0 0.0
    %785 = vmatprep.subr.mxu0 0.0
    %786 = vmatpush1.msra.mxu0 0.0
    %787 = vmatprep.subr.mxu0 0.0
    %788 = vmatpush1.msra.mxu0 0.0
    %789 = vmatprep.subr.mxu0 0.0
    %790 = vmatpush1.msra.mxu0 0.0
    %791 = vmatprep.subr.mxu0 0.0
    %792 = vmatpush1.msra.mxu0 0.0
    %793 = vmatprep.subr.mxu0 0.0
    %794 = vmatpush1.msra.mxu0 0.0
    %795 = vmatprep.subr.mxu0 0.0
    %796 = vmatpush1.msra.mxu0 0.0
    %797 = vmatprep.subr.mxu0 0.0
    %798 = vmatpush1.msra.mxu0 0.0
    %799 = vmatprep.subr.mxu0 0.0
    %800 = vmatpush1.msra.mxu0 0.0
    %801 = vmatprep.subr.mxu0 0.0
    %802 = vmatpush1.msra.mxu0 %v693
    %803 = vmatprep.subr.mxu0 0.0
    %804 = vmatpush2.msra.mxu0 0.0
    %805 = vmatprep.subr.mxu0 0.0
    %806 = vmatpush2.msra.mxu0 0.0
    %807 = vmatprep.subr.mxu0 0.0
    %808 = vmatpush2.msra.mxu0 0.0
    %809 = vmatprep.subr.mxu0 0.0
    %810 = vmatpush2.msra.mxu0 0.0
    %811 = vmatprep.subr.mxu0 0.0
    %812 = vmatpush2.msra.mxu0 0.0
    %813 = vmatprep.subr.mxu0 0.0
    %814 = vmatpush2.msra.mxu0 0.0
    %815 = vmatprep.subr.mxu0 0.0
    %816 = vmatpush2.msra.mxu0 0.0
    %817 = vmatprep.subr.mxu0 0.0
    %818 = vmatpush2.msra.mxu0 0.0
    %819 = vmatprep.subr.mxu0 0.0
    %820 = vmatpush2.msra.mxu0 0.0
    %821 = vmatprep.subr.mxu0 0.0
    %822 = vmatpush2.msra.mxu0 0.0
    %823 = vmatprep.subr.mxu0 0.0
    %824 = vmatpush2.msra.mxu0 0.0
    %825 = vmatprep.subr.mxu0 0.0
    %826 = vmatpush2.msra.mxu0 0.0
    %827 = vmatprep.subr.mxu0 0.0
    %828 = vmatpush2.msra.mxu0 0.0
    %829 = vmatprep.subr.mxu0 0.0
    %830 = vmatpush2.msra.mxu0 0.0
    %831 = vmatprep.subr.mxu0 0.0
    %832 = vmatpush2.msra.mxu0 0.0
    %833 = vmatprep.subr.mxu0 0.0
    %834 = vmatpush2.msra.mxu0 0.0
    %835 = vmatprep.mubr.f32.mxu0 0.0
    %836 = vmatmul.mubr.f32.gmra.mxu0 %v769
    %v837 = vpop.f32.mrf.mxu0
    %v838 = vadd.f32 0.0, %v837
    %v839 = vpop.f32.mrf.mxu0
    %840 = vdwg.mxu0
    %v841 = vlaneseq
    %v842 = vshrl.u32 %v841, 7
    %v843 = vsub.s32 0, %v842
    %v844 = vrot.slane %v765, %v843
    %v845 = vmul.f32 %v500, %v844
    %v846 = vmul.f32 %v501, %v844
    %v847 = vmul.f32 %v502, %v844
    %v848 = vmul.f32 %v503, %v844
    %v849 = vlaneseq
    %v850 = vshrl.u32 %v849, 7
    %v851 = vsub.s32 0, %v850
    %v852 = vrot.slane %v838, %v851
    %v853 = vadd.f32 %v845, %v852
    %v854 = vadd.f32 %v846, %v852
    %v855 = vadd.f32 %v847, %v852
    %v856 = vadd.f32 %v848, %v852
    %v857 = vmax.f32 %v853, 0.0
    %v858 = vmax.f32 %v854, 0.0
    %v859 = vmax.f32 %v855, 0.0
    %v860 = vmax.f32 %v856, 0.0
    %v861 = vrot.slane %v857, 7
    %v862 = vrot.slane %v858, 7
    %v863 = vrot.slane %v859, 7
    %v864 = vrot.slane %v860, 7
    %v865 = vsel %vm131, %v863, %v864
    %v866 = vsel %vm131, %v862, %v863
    %v867 = vsel %vm131, %v861, %v862
    %v868 = vsel %vm131, %v864, %v861
    %v869 = vsel %vm115, 0.0, %v868
    %v870 = vsel %vm116, 0.0, %v867
    %v871 = vsel %vm117, 0.0, %v866
    %v872 = vsel %vm118, 0.0, %v865
    %v873 = vrot.slane %v857, 1
    %v874 = vrot.slane %v858, 1
    %v875 = vrot.slane %v859, 1
    %v876 = vrot.slane %v860, 1
    %v877 = vsel %vm144, %v875, %v876
    %v878 = vsel %vm144, %v874, %v875
    %v879 = vsel %vm144, %v873, %v874
    %v880 = vsel %vm144, %v876, %v873
    %v881 = vsel %vm119, 0.0, %v879
    %v882 = vsel %vm120, 0.0, %v878
    %v883 = vsel %vm121, 0.0, %v877
    %v884 = vsel %vm122, 0.0, %v880
    %v885 = vpack.c.bf16 %v870, %v869
    %v886 = vpack.c.bf16 %v872, %v871
    %v887 = vpack.c.bf16 %v858, %v857
    %v888 = vpack.c.bf16 %v860, %v859
    %v889 = vpack.c.bf16 %v882, %v881
    %v890 = vpack.c.bf16 %v884, %v883
    %v891 = vld [vmem:[#allocation5] sm:$0xf]
    %v892 = vld [vmem:[#allocation5 + $0x4] sm:$0xf]
    %v893 = vld [vmem:[#allocation5 + $0x8] sm:$0xf]
    %v894 = vld [vmem:[#allocation5 + $0xc] sm:$0xf]
    %v895 = vld [vmem:[#allocation5 + $0x10] sm:$0xf]
    %v896 = vld [vmem:[#allocation5 + $0x14] sm:$0xf]
    %v897 = vld [vmem:[#allocation5 + $0x18] sm:$0xf]
    %v898 = vld [vmem:[#allocation5 + $0x1c] sm:$0xf]
    %v899 = vld [vmem:[#allocation5 + $0x20] sm:$0xf]
    %v900 = vld [vmem:[#allocation5 + $0x24] sm:$0xf]
    %v901 = vld [vmem:[#allocation5 + $0x28] sm:$0xf]
    %v902 = vld [vmem:[#allocation5 + $0x2c] sm:$0xf]
    %v903 = vld [vmem:[#allocation5 + $0x30] sm:$0xf]
    %v904 = vld [vmem:[#allocation5 + $0x34] sm:$0xf]
    %v905 = vld [vmem:[#allocation5 + $0x38] sm:$0xf]
    %v906 = vld [vmem:[#allocation5 + $0x3c] sm:$0xf]
    %s907 = scalar_lea.vmem [#allocation5], 64
    %v908 = vld [vmem:[%s907] sm:$0xf]
    %v909 = vld [vmem:[%s907 + $0x4] sm:$0xf]
    %v910 = vld [vmem:[%s907 + $0x8] sm:$0xf]
    %v911 = vld [vmem:[%s907 + $0xc] sm:$0xf]
    %v912 = vld [vmem:[%s907 + $0x10] sm:$0xf]
    %v913 = vld [vmem:[%s907 + $0x14] sm:$0xf]
    %v914 = vld [vmem:[%s907 + $0x18] sm:$0xf]
    %v915 = vld [vmem:[%s907 + $0x1c] sm:$0xf]
    %v916 = vld [vmem:[%s907 + $0x20] sm:$0xf]
    %v917 = vld [vmem:[%s907 + $0x24] sm:$0xf]
    %v918 = vld [vmem:[%s907 + $0x28] sm:$0xf]
    %v919 = vld [vmem:[%s907 + $0x2c] sm:$0xf]
    %v920 = vld [vmem:[%s907 + $0x30] sm:$0xf]
    %v921 = vld [vmem:[%s907 + $0x34] sm:$0xf]
    %v922 = vld [vmem:[%s907 + $0x38] sm:$0xf]
    %v923 = vld [vmem:[%s907 + $0x3c] sm:$0xf]
    %v940 = vunpack.c.l.b16 %v908
    %v941 = vunpack.c.l.b16 %v909
    %v942 = vunpack.c.l.b16 %v910
    %v943 = vunpack.c.l.b16 %v911
    %v944 = vunpack.c.l.b16 %v912
    %v945 = vunpack.c.l.b16 %v913
    %v946 = vunpack.c.l.b16 %v914
    %v947 = vunpack.c.l.b16 %v915
    %v948 = vunpack.c.l.b16 %v916
    %v949 = vunpack.c.l.b16 %v917
    %v950 = vunpack.c.l.b16 %v918
    %v951 = vunpack.c.l.b16 %v919
    %v952 = vunpack.c.l.b16 %v920
    %v953 = vunpack.c.l.b16 %v921
    %v954 = vunpack.c.l.b16 %v922
    %v955 = vunpack.c.l.b16 %v923
    %v956 = vpack.c.b16 %v941, %v940
    %v957 = vpack.c.b16 %v943, %v942
    %v958 = vpack.c.b16 %v945, %v944
    %v959 = vpack.c.b16 %v947, %v946
    %v960 = vpack.c.b16 %v949, %v948
    %v961 = vpack.c.b16 %v951, %v950
    %v962 = vpack.c.b16 %v953, %v952
    %v963 = vpack.c.b16 %v955, %v954
    %972 = vmatprep.subr.bf16.mxu0 0
    %973 = vmatpush1.bf16.msra.mxu0 %v963
    %974 = vmatprep.subr.bf16.mxu0 0
    %975 = vmatpush1.bf16.msra.mxu0 %v962
    %976 = vmatprep.subr.bf16.mxu0 0
    %977 = vmatpush1.bf16.msra.mxu0 %v961
    %978 = vmatprep.subr.bf16.mxu0 0
    %979 = vmatpush1.bf16.msra.mxu0 %v960
    %980 = vmatprep.subr.bf16.mxu0 0
    %981 = vmatpush1.bf16.msra.mxu0 %v959
    %982 = vmatprep.subr.bf16.mxu0 0
    %983 = vmatpush1.bf16.msra.mxu0 %v958
    %984 = vmatprep.subr.bf16.mxu0 0
    %985 = vmatpush1.bf16.msra.mxu0 %v957
    %986 = vmatprep.subr.bf16.mxu0 0
    %987 = vmatpush1.bf16.msra.mxu0 %v956
    %988 = vmatprep.subr.bf16.mxu0 0
    %989 = vmatpush2.bf16.msra.mxu0 0
    %990 = vmatprep.subr.bf16.mxu0 0
    %991 = vmatpush2.bf16.msra.mxu0 0
    %992 = vmatprep.subr.bf16.mxu0 0
    %993 = vmatpush2.bf16.msra.mxu0 0
    %994 = vmatprep.subr.bf16.mxu0 0
    %995 = vmatpush2.bf16.msra.mxu0 0
    %996 = vmatprep.subr.bf16.mxu0 0
    %997 = vmatpush2.bf16.msra.mxu0 0
    %998 = vmatprep.subr.bf16.mxu0 0
    %999 = vmatpush2.bf16.msra.mxu0 0
    %1000 = vmatprep.subr.bf16.mxu0 0
    %1001 = vmatpush2.bf16.msra.mxu0 0
    %1002 = vmatprep.subr.bf16.mxu0 0
    %1003 = vmatpush2.bf16.msra.mxu0 0
    %1004 = vmatprep.mubr.bf16.mxu0 0
    %1005 = vmatmul.mubr.bf16.gmra.mxu0 %v887
    %v1006 = vpop.f32.mrf.mxu0
    %v1007 = vadd.f32 0.0, %v1006
    %v1008 = vpop.f32.mrf.mxu0
    %v1009 = vpop.f32.mrf.mxu0
    %v1010 = vadd.f32 0.0, %v1009
    %v1011 = vpop.f32.mrf.mxu0
    %1012 = vmatprep.mubr.bf16.mxu0 0
    %1013 = vmatmul.mubr.bf16.gmra.mxu0 %v888
    %v1014 = vpop.f32.mrf.mxu0
    %v1015 = vadd.f32 0.0, %v1014
    %v1016 = vpop.f32.mrf.mxu0
    %v1017 = vpop.f32.mrf.mxu0
    %v1018 = vadd.f32 0.0, %v1017
    %v1019 = vpop.f32.mrf.mxu0
    %1020 = vdwg.mxu0
    %v1037 = vunpack.c.l.b16 %v891
    %v1038 = vunpack.c.l.b16 %v892
    %v1039 = vunpack.c.l.b16 %v893
    %v1040 = vunpack.c.l.b16 %v894
    %v1041 = vunpack.c.l.b16 %v895
    %v1042 = vunpack.c.l.b16 %v896
    %v1043 = vunpack.c.l.b16 %v897
    %v1044 = vunpack.c.l.b16 %v898
    %v1045 = vunpack.c.l.b16 %v899
    %v1046 = vunpack.c.l.b16 %v900
    %v1047 = vunpack.c.l.b16 %v901
    %v1048 = vunpack.c.l.b16 %v902
    %v1049 = vunpack.c.l.b16 %v903
    %v1050 = vunpack.c.l.b16 %v904
    %v1051 = vunpack.c.l.b16 %v905
    %v1052 = vunpack.c.l.b16 %v906
    %v1053 = vpack.c.b16 %v1038, %v1037
    %v1054 = vpack.c.b16 %v1040, %v1039
    %v1055 = vpack.c.b16 %v1042, %v1041
    %v1056 = vpack.c.b16 %v1044, %v1043
    %v1057 = vpack.c.b16 %v1046, %v1045
    %v1058 = vpack.c.b16 %v1048, %v1047
    %v1059 = vpack.c.b16 %v1050, %v1049
    %v1060 = vpack.c.b16 %v1052, %v1051
    %1069 = vmatprep.subr.bf16.mxu0 0
    %1070 = vmatpush1.bf16.msra.mxu0 %v1060
    %1071 = vmatprep.subr.bf16.mxu0 0
    %1072 = vmatpush1.bf16.msra.mxu0 %v1059
    %1073 = vmatprep.subr.bf16.mxu0 0
    %1074 = vmatpush1.bf16.msra.mxu0 %v1058
    %1075 = vmatprep.subr.bf16.mxu0 0
    %1076 = vmatpush1.bf16.msra.mxu0 %v1057
    %1077 = vmatprep.subr.bf16.mxu0 0
    %1078 = vmatpush1.bf16.msra.mxu0 %v1056
    %1079 = vmatprep.subr.bf16.mxu0 0
    %1080 = vmatpush1.bf16.msra.mxu0 %v1055
    %1081 = vmatprep.subr.bf16.mxu0 0
    %1082 = vmatpush1.bf16.msra.mxu0 %v1054
    %1083 = vmatprep.subr.bf16.mxu0 0
    %1084 = vmatpush1.bf16.msra.mxu0 %v1053
    %1085 = vmatprep.subr.bf16.mxu0 0
    %1086 = vmatpush2.bf16.msra.mxu0 0
    %1087 = vmatprep.subr.bf16.mxu0 0
    %1088 = vmatpush2.bf16.msra.mxu0 0
    %1089 = vmatprep.subr.bf16.mxu0 0
    %1090 = vmatpush2.bf16.msra.mxu0 0
    %1091 = vmatprep.subr.bf16.mxu0 0
    %1092 = vmatpush2.bf16.msra.mxu0 0
    %1093 = vmatprep.subr.bf16.mxu0 0
    %1094 = vmatpush2.bf16.msra.mxu0 0
    %1095 = vmatprep.subr.bf16.mxu0 0
    %1096 = vmatpush2.bf16.msra.mxu0 0
    %1097 = vmatprep.subr.bf16.mxu0 0
    %1098 = vmatpush2.bf16.msra.mxu0 0
    %1099 = vmatprep.subr.bf16.mxu0 0
    %1100 = vmatpush2.bf16.msra.mxu0 0
    %1101 = vmatprep.mubr.bf16.mxu0 0
    %1102 = vmatmul.mubr.bf16.gmra.mxu0 %v885
    %v1103 = vpop.f32.mrf.mxu0
    %v1104 = vadd.f32 %v1007, %v1103
    %v1105 = vpop.f32.mrf.mxu0
    %v1106 = vpop.f32.mrf.mxu0
    %v1107 = vadd.f32 %v1010, %v1106
    %v1108 = vpop.f32.mrf.mxu0
    %1109 = vmatprep.mubr.bf16.mxu0 0
    %1110 = vmatmul.mubr.bf16.gmra.mxu0 %v886
    %v1111 = vpop.f32.mrf.mxu0
    %v1112 = vadd.f32 %v1015, %v1111
    %v1113 = vpop.f32.mrf.mxu0
    %v1114 = vpop.f32.mrf.mxu0
    %v1115 = vadd.f32 %v1018, %v1114
    %v1116 = vpop.f32.mrf.mxu0
    %1117 = vdwg.mxu0
    %s1118 = scalar_lea.vmem [#allocation5], 128
    %v1119 = vld [vmem:[%s1118] sm:$0xf]
    %v1120 = vld [vmem:[%s1118 + $0x4] sm:$0xf]
    %v1121 = vld [vmem:[%s1118 + $0x8] sm:$0xf]
    %v1122 = vld [vmem:[%s1118 + $0xc] sm:$0xf]
    %v1123 = vld [vmem:[%s1118 + $0x10] sm:$0xf]
    %v1124 = vld [vmem:[%s1118 + $0x14] sm:$0xf]
    %v1125 = vld [vmem:[%s1118 + $0x18] sm:$0xf]
    %v1126 = vld [vmem:[%s1118 + $0x1c] sm:$0xf]
    %v1127 = vld [vmem:[%s1118 + $0x20] sm:$0xf]
    %v1128 = vld [vmem:[%s1118 + $0x24] sm:$0xf]
    %v1129 = vld [vmem:[%s1118 + $0x28] sm:$0xf]
    %v1130 = vld [vmem:[%s1118 + $0x2c] sm:$0xf]
    %v1131 = vld [vmem:[%s1118 + $0x30] sm:$0xf]
    %v1132 = vld [vmem:[%s1118 + $0x34] sm:$0xf]
    %v1133 = vld [vmem:[%s1118 + $0x38] sm:$0xf]
    %v1134 = vld [vmem:[%s1118 + $0x3c] sm:$0xf]
    %v1151 = vunpack.c.l.b16 %v1119
    %v1152 = vunpack.c.l.b16 %v1120
    %v1153 = vunpack.c.l.b16 %v1121
    %v1154 = vunpack.c.l.b16 %v1122
    %v1155 = vunpack.c.l.b16 %v1123
    %v1156 = vunpack.c.l.b16 %v1124
    %v1157 = vunpack.c.l.b16 %v1125
    %v1158 = vunpack.c.l.b16 %v1126
    %v1159 = vunpack.c.l.b16 %v1127
    %v1160 = vunpack.c.l.b16 %v1128
    %v1161 = vunpack.c.l.b16 %v1129
    %v1162 = vunpack.c.l.b16 %v1130
    %v1163 = vunpack.c.l.b16 %v1131
    %v1164 = vunpack.c.l.b16 %v1132
    %v1165 = vunpack.c.l.b16 %v1133
    %v1166 = vunpack.c.l.b16 %v1134
    %v1167 = vpack.c.b16 %v1152, %v1151
    %v1168 = vpack.c.b16 %v1154, %v1153
    %v1169 = vpack.c.b16 %v1156, %v1155
    %v1170 = vpack.c.b16 %v1158, %v1157
    %v1171 = vpack.c.b16 %v1160, %v1159
    %v1172 = vpack.c.b16 %v1162, %v1161
    %v1173 = vpack.c.b16 %v1164, %v1163
    %v1174 = vpack.c.b16 %v1166, %v1165
    %1183 = vmatprep.subr.bf16.mxu0 0
    %1184 = vmatpush1.bf16.msra.mxu0 %v1174
    %1185 = vmatprep.subr.bf16.mxu0 0
    %1186 = vmatpush1.bf16.msra.mxu0 %v1173
    %1187 = vmatprep.subr.bf16.mxu0 0
    %1188 = vmatpush1.bf16.msra.mxu0 %v1172
    %1189 = vmatprep.subr.bf16.mxu0 0
    %1190 = vmatpush1.bf16.msra.mxu0 %v1171
    %1191 = vmatprep.subr.bf16.mxu0 0
    %1192 = vmatpush1.bf16.msra.mxu0 %v1170
    %1193 = vmatprep.subr.bf16.mxu0 0
    %1194 = vmatpush1.bf16.msra.mxu0 %v1169
    %1195 = vmatprep.subr.bf16.mxu0 0
    %1196 = vmatpush1.bf16.msra.mxu0 %v1168
    %1197 = vmatprep.subr.bf16.mxu0 0
    %1198 = vmatpush1.bf16.msra.mxu0 %v1167
    %1199 = vmatprep.subr.bf16.mxu0 0
    %1200 = vmatpush2.bf16.msra.mxu0 0
    %1201 = vmatprep.subr.bf16.mxu0 0
    %1202 = vmatpush2.bf16.msra.mxu0 0
    %1203 = vmatprep.subr.bf16.mxu0 0
    %1204 = vmatpush2.bf16.msra.mxu0 0
    %1205 = vmatprep.subr.bf16.mxu0 0
    %1206 = vmatpush2.bf16.msra.mxu0 0
    %1207 = vmatprep.subr.bf16.mxu0 0
    %1208 = vmatpush2.bf16.msra.mxu0 0
    %1209 = vmatprep.subr.bf16.mxu0 0
    %1210 = vmatpush2.bf16.msra.mxu0 0
    %1211 = vmatprep.subr.bf16.mxu0 0
    %1212 = vmatpush2.bf16.msra.mxu0 0
    %1213 = vmatprep.subr.bf16.mxu0 0
    %1214 = vmatpush2.bf16.msra.mxu0 0
    %1215 = vmatprep.mubr.bf16.mxu0 0
    %1216 = vmatmul.mubr.bf16.gmra.mxu0 %v889
    %v1217 = vpop.f32.mrf.mxu0
    %v1218 = vadd.f32 0.0, %v1217
    %v1219 = vpop.f32.mrf.mxu0
    %v1220 = vpop.f32.mrf.mxu0
    %v1221 = vadd.f32 0.0, %v1220
    %v1222 = vpop.f32.mrf.mxu0
    %1223 = vmatprep.mubr.bf16.mxu0 0
    %1224 = vmatmul.mubr.bf16.gmra.mxu0 %v890
    %v1225 = vpop.f32.mrf.mxu0
    %v1226 = vadd.f32 0.0, %v1225
    %v1227 = vpop.f32.mrf.mxu0
    %v1228 = vpop.f32.mrf.mxu0
    %v1229 = vadd.f32 0.0, %v1228
    %v1230 = vpop.f32.mrf.mxu0
    %1231 = vdwg.mxu0
    %v1232 = vadd.f32 %v1104, %v1218
    %v1233 = vadd.f32 %v1107, %v1221
    %v1234 = vadd.f32 %v1112, %v1226
    %v1235 = vadd.f32 %v1115, %v1229
    %v1236 = vadd.f32 %v1232, %v1233
    %v1237 = vadd.f32 %v1236, %v1234
    %v1238 = vadd.f32 %v1237, %v1235
    %v1239 = vrot.slane %v1238, 4
    %v1240 = vadd.f32 %v1238, %v1239
    %v1241 = vrot.slane %v1240, 2
    %v1242 = vadd.f32 %v1240, %v1241
    %v1243 = vrot.slane %v1242, 1
    %v1244 = vadd.f32 %v1242, %v1243
    %v1245 = vmul.f32 %v1232, %v1232
    %v1246 = vmul.f32 %v1233, %v1233
    %v1247 = vmul.f32 %v1234, %v1234
    %v1248 = vmul.f32 %v1235, %v1235
    %v1249 = vadd.f32 %v1245, %v1246
    %v1250 = vadd.f32 %v1249, %v1247
    %v1251 = vadd.f32 %v1250, %v1248
    %v1252 = vrot.slane %v1251, 4
    %v1253 = vadd.f32 %v1251, %v1252
    %v1254 = vrot.slane %v1253, 2
    %v1255 = vadd.f32 %v1253, %v1254
    %v1256 = vrot.slane %v1255, 1
    %v1257 = vadd.f32 %v1255, %v1256
    %1258 = vmatprep.subr.mxu0 0.0
    %1259 = vmatpush1.msra.mxu0 %v541
    %1260 = vmatprep.subr.mxu0 0.0
    %1261 = vmatpush1.msra.mxu0 %v540
    %1262 = vmatprep.subr.mxu0 0.0
    %1263 = vmatpush1.msra.mxu0 %v539
    %1264 = vmatprep.subr.mxu0 0.0
    %1265 = vmatpush1.msra.mxu0 %v538
    %1266 = vmatprep.subr.mxu0 0.0
    %1267 = vmatpush1.msra.mxu0 %v537
    %1268 = vmatprep.subr.mxu0 0.0
    %1269 = vmatpush1.msra.mxu0 %v536
    %1270 = vmatprep.subr.mxu0 0.0
    %1271 = vmatpush1.msra.mxu0 %v535
    %1272 = vmatprep.subr.mxu0 0.0
    %1273 = vmatpush1.msra.mxu0 %v534
    %1274 = vmatprep.subr.mxu0 0.0
    %1275 = vmatpush1.msra.mxu0 %v533
    %1276 = vmatprep.subr.mxu0 0.0
    %1277 = vmatpush1.msra.mxu0 %v532
    %1278 = vmatprep.subr.mxu0 0.0
    %1279 = vmatpush1.msra.mxu0 %v531
    %1280 = vmatprep.subr.mxu0 0.0
    %1281 = vmatpush1.msra.mxu0 %v530
    %1282 = vmatprep.subr.mxu0 0.0
    %1283 = vmatpush1.msra.mxu0 %v529
    %1284 = vmatprep.subr.mxu0 0.0
    %1285 = vmatpush1.msra.mxu0 %v528
    %1286 = vmatprep.subr.mxu0 0.0
    %1287 = vmatpush1.msra.mxu0 %v527
    %1288 = vmatprep.subr.mxu0 0.0
    %1289 = vmatpush1.msra.mxu0 %v526
    %1290 = vmatprep.subr.mxu0 0.0
    %1291 = vmatpush2.msra.mxu0 0.0
    %1292 = vmatprep.subr.mxu0 0.0
    %1293 = vmatpush2.msra.mxu0 0.0
    %1294 = vmatprep.subr.mxu0 0.0
    %1295 = vmatpush2.msra.mxu0 0.0
    %1296 = vmatprep.subr.mxu0 0.0
    %1297 = vmatpush2.msra.mxu0 0.0
    %1298 = vmatprep.subr.mxu0 0.0
    %1299 = vmatpush2.msra.mxu0 0.0
    %1300 = vmatprep.subr.mxu0 0.0
    %1301 = vmatpush2.msra.mxu0 0.0
    %1302 = vmatprep.subr.mxu0 0.0
    %1303 = vmatpush2.msra.mxu0 0.0
    %1304 = vmatprep.subr.mxu0 0.0
    %1305 = vmatpush2.msra.mxu0 0.0
    %1306 = vmatprep.subr.mxu0 0.0
    %1307 = vmatpush2.msra.mxu0 0.0
    %1308 = vmatprep.subr.mxu0 0.0
    %1309 = vmatpush2.msra.mxu0 0.0
    %1310 = vmatprep.subr.mxu0 0.0
    %1311 = vmatpush2.msra.mxu0 0.0
    %1312 = vmatprep.subr.mxu0 0.0
    %1313 = vmatpush2.msra.mxu0 0.0
    %1314 = vmatprep.subr.mxu0 0.0
    %1315 = vmatpush2.msra.mxu0 0.0
    %1316 = vmatprep.subr.mxu0 0.0
    %1317 = vmatpush2.msra.mxu0 0.0
    %1318 = vmatprep.subr.mxu0 0.0
    %1319 = vmatpush2.msra.mxu0 0.0
    %1320 = vmatprep.subr.mxu0 0.0
    %1321 = vmatpush2.msra.mxu0 0.0
    %1322 = vmatprep.mubr.f32.mxu0 0.0
    %1323 = vmatmul.mubr.f32.gmra.mxu0 %v1244
    %v1324 = vpop.f32.mrf.mxu0
    %v1325 = vadd.f32 0.0, %v1324
    %v1326 = vpop.f32.mrf.mxu0
    %1327 = vdwg.mxu0
    %v1328 = vmul.f32 %v1325, 0.001953125
    %1329 = vmatprep.subr.mxu0 0.0
    %1330 = vmatpush1.msra.mxu0 %v541
    %1331 = vmatprep.subr.mxu0 0.0
    %1332 = vmatpush1.msra.mxu0 %v540
    %1333 = vmatprep.subr.mxu0 0.0
    %1334 = vmatpush1.msra.mxu0 %v539
    %1335 = vmatprep.subr.mxu0 0.0
    %1336 = vmatpush1.msra.mxu0 %v538
    %1337 = vmatprep.subr.mxu0 0.0
    %1338 = vmatpush1.msra.mxu0 %v537
    %1339 = vmatprep.subr.mxu0 0.0
    %1340 = vmatpush1.msra.mxu0 %v536
    %1341 = vmatprep.subr.mxu0 0.0
    %1342 = vmatpush1.msra.mxu0 %v535
    %1343 = vmatprep.subr.mxu0 0.0
    %1344 = vmatpush1.msra.mxu0 %v534
    %1345 = vmatprep.subr.mxu0 0.0
    %1346 = vmatpush1.msra.mxu0 %v533
    %1347 = vmatprep.subr.mxu0 0.0
    %1348 = vmatpush1.msra.mxu0 %v532
    %1349 = vmatprep.subr.mxu0 0.0
    %1350 = vmatpush1.msra.mxu0 %v531
    %1351 = vmatprep.subr.mxu0 0.0
    %1352 = vmatpush1.msra.mxu0 %v530
    %1353 = vmatprep.subr.mxu0 0.0
    %1354 = vmatpush1.msra.mxu0 %v529
    %1355 = vmatprep.subr.mxu0 0.0
    %1356 = vmatpush1.msra.mxu0 %v528
    %1357 = vmatprep.subr.mxu0 0.0
    %1358 = vmatpush1.msra.mxu0 %v527
    %1359 = vmatprep.subr.mxu0 0.0
    %1360 = vmatpush1.msra.mxu0 %v526
    %1361 = vmatprep.subr.mxu0 0.0
    %1362 = vmatpush2.msra.mxu0 0.0
    %1363 = vmatprep.subr.mxu0 0.0
    %1364 = vmatpush2.msra.mxu0 0.0
    %1365 = vmatprep.subr.mxu0 0.0
    %1366 = vmatpush2.msra.mxu0 0.0
    %1367 = vmatprep.subr.mxu0 0.0
    %1368 = vmatpush2.msra.mxu0 0.0
    %1369 = vmatprep.subr.mxu0 0.0
    %1370 = vmatpush2.msra.mxu0 0.0
    %1371 = vmatprep.subr.mxu0 0.0
    %1372 = vmatpush2.msra.mxu0 0.0
    %1373 = vmatprep.subr.mxu0 0.0
    %1374 = vmatpush2.msra.mxu0 0.0
    %1375 = vmatprep.subr.mxu0 0.0
    %1376 = vmatpush2.msra.mxu0 0.0
    %1377 = vmatprep.subr.mxu0 0.0
    %1378 = vmatpush2.msra.mxu0 0.0
    %1379 = vmatprep.subr.mxu0 0.0
    %1380 = vmatpush2.msra.mxu0 0.0
    %1381 = vmatprep.subr.mxu0 0.0
    %1382 = vmatpush2.msra.mxu0 0.0
    %1383 = vmatprep.subr.mxu0 0.0
    %1384 = vmatpush2.msra.mxu0 0.0
    %1385 = vmatprep.subr.mxu0 0.0
    %1386 = vmatpush2.msra.mxu0 0.0
    %1387 = vmatprep.subr.mxu0 0.0
    %1388 = vmatpush2.msra.mxu0 0.0
    %1389 = vmatprep.subr.mxu0 0.0
    %1390 = vmatpush2.msra.mxu0 0.0
    %1391 = vmatprep.subr.mxu0 0.0
    %1392 = vmatpush2.msra.mxu0 0.0
    %1393 = vmatprep.mubr.f32.mxu0 0.0
    %1394 = vmatmul.mubr.f32.gmra.mxu0 %v1257
    %v1395 = vpop.f32.mrf.mxu0
    %v1396 = vadd.f32 0.0, %v1395
    %v1397 = vpop.f32.mrf.mxu0
    %1398 = vdwg.mxu0
    %v1399 = vmul.f32 %v1396, 0.001953125
    %v1400 = vmul.f32 %v1328, %v1328
    %v1401 = vsub.f32 %v1399, %v1400
    %v1402 = vld [vmem:[%s5] sm:$0x1]
    %v1403 = vadd.f32 %v1401, 1e-05
    %v1404 = vrsqrt.pop %v1403
    %v1405 = vmul.f32 %v1402, %v1404
    %v1406 = vld [vmem:[%s6] sm:$0x1]
    %v1407 = vmul.f32 %v1328, %v1405
    %v1408 = vsub.f32 %v1406, %v1407
    %v1410 = vsel %vm694, %v1405, 0
    %1412 = vmatprep.subr.mxu0 0.0
    %1413 = vmatpush1.msra.mxu0 0.0
    %1414 = vmatprep.subr.mxu0 0.0
    %1415 = vmatpush1.msra.mxu0 0.0
    %1416 = vmatprep.subr.mxu0 0.0
    %1417 = vmatpush1.msra.mxu0 0.0
    %1418 = vmatprep.subr.mxu0 0.0
    %1419 = vmatpush1.msra.mxu0 0.0
    %1420 = vmatprep.subr.mxu0 0.0
    %1421 = vmatpush1.msra.mxu0 0.0
    %1422 = vmatprep.subr.mxu0 0.0
    %1423 = vmatpush1.msra.mxu0 0.0
    %1424 = vmatprep.subr.mxu0 0.0
    %1425 = vmatpush1.msra.mxu0 0.0
    %1426 = vmatprep.subr.mxu0 0.0
    %1427 = vmatpush1.msra.mxu0 0.0
    %1428 = vmatprep.subr.mxu0 0.0
    %1429 = vmatpush1.msra.mxu0 0.0
    %1430 = vmatprep.subr.mxu0 0.0
    %1431 = vmatpush1.msra.mxu0 0.0
    %1432 = vmatprep.subr.mxu0 0.0
    %1433 = vmatpush1.msra.mxu0 0.0
    %1434 = vmatprep.subr.mxu0 0.0
    %1435 = vmatpush1.msra.mxu0 0.0
    %1436 = vmatprep.subr.mxu0 0.0
    %1437 = vmatpush1.msra.mxu0 0.0
    %1438 = vmatprep.subr.mxu0 0.0
    %1439 = vmatpush1.msra.mxu0 0.0
    %1440 = vmatprep.subr.mxu0 0.0
    %1441 = vmatpush1.msra.mxu0 0.0
    %1442 = vmatprep.subr.mxu0 0.0
    %1443 = vmatpush1.msra.mxu0 %v693
    %1444 = vmatprep.subr.mxu0 0.0
    %1445 = vmatpush2.msra.mxu0 0.0
    %1446 = vmatprep.subr.mxu0 0.0
    %1447 = vmatpush2.msra.mxu0 0.0
    %1448 = vmatprep.subr.mxu0 0.0
    %1449 = vmatpush2.msra.mxu0 0.0
    %1450 = vmatprep.subr.mxu0 0.0
    %1451 = vmatpush2.msra.mxu0 0.0
    %1452 = vmatprep.subr.mxu0 0.0
    %1453 = vmatpush2.msra.mxu0 0.0
    %1454 = vmatprep.subr.mxu0 0.0
    %1455 = vmatpush2.msra.mxu0 0.0
    %1456 = vmatprep.subr.mxu0 0.0
    %1457 = vmatpush2.msra.mxu0 0.0
    %1458 = vmatprep.subr.mxu0 0.0
    %1459 = vmatpush2.msra.mxu0 0.0
    %1460 = vmatprep.subr.mxu0 0.0
    %1461 = vmatpush2.msra.mxu0 0.0
    %1462 = vmatprep.subr.mxu0 0.0
    %1463 = vmatpush2.msra.mxu0 0.0
    %1464 = vmatprep.subr.mxu0 0.0
    %1465 = vmatpush2.msra.mxu0 0.0
    %1466 = vmatprep.subr.mxu0 0.0
    %1467 = vmatpush2.msra.mxu0 0.0
    %1468 = vmatprep.subr.mxu0 0.0
    %1469 = vmatpush2.msra.mxu0 0.0
    %1470 = vmatprep.subr.mxu0 0.0
    %1471 = vmatpush2.msra.mxu0 0.0
    %1472 = vmatprep.subr.mxu0 0.0
    %1473 = vmatpush2.msra.mxu0 0.0
    %1474 = vmatprep.subr.mxu0 0.0
    %1475 = vmatpush2.msra.mxu0 0.0
    %1476 = vmatprep.mubr.f32.mxu0 0.0
    %1477 = vmatmul.mubr.f32.gmra.mxu0 %v1410
    %v1478 = vpop.f32.mrf.mxu0
    %v1479 = vadd.f32 0.0, %v1478
    %v1480 = vpop.f32.mrf.mxu0
    %1481 = vdwg.mxu0
    %v1483 = vsel %vm694, %v1408, 0
    %1485 = vmatprep.subr.mxu0 0.0
    %1486 = vmatpush1.msra.mxu0 0.0
    %1487 = vmatprep.subr.mxu0 0.0
    %1488 = vmatpush1.msra.mxu0 0.0
    %1489 = vmatprep.subr.mxu0 0.0
    %1490 = vmatpush1.msra.mxu0 0.0
    %1491 = vmatprep.subr.mxu0 0.0
    %1492 = vmatpush1.msra.mxu0 0.0
    %1493 = vmatprep.subr.mxu0 0.0
    %1494 = vmatpush1.msra.mxu0 0.0
    %1495 = vmatprep.subr.mxu0 0.0
    %1496 = vmatpush1.msra.mxu0 0.0
    %1497 = vmatprep.subr.mxu0 0.0
    %1498 = vmatpush1.msra.mxu0 0.0
    %1499 = vmatprep.subr.mxu0 0.0
    %1500 = vmatpush1.msra.mxu0 0.0
    %1501 = vmatprep.subr.mxu0 0.0
    %1502 = vmatpush1.msra.mxu0 0.0
    %1503 = vmatprep.subr.mxu0 0.0
    %1504 = vmatpush1.msra.mxu0 0.0
    %1505 = vmatprep.subr.mxu0 0.0
    %1506 = vmatpush1.msra.mxu0 0.0
    %1507 = vmatprep.subr.mxu0 0.0
    %1508 = vmatpush1.msra.mxu0 0.0
    %1509 = vmatprep.subr.mxu0 0.0
    %1510 = vmatpush1.msra.mxu0 0.0
    %1511 = vmatprep.subr.mxu0 0.0
    %1512 = vmatpush1.msra.mxu0 0.0
    %1513 = vmatprep.subr.mxu0 0.0
    %1514 = vmatpush1.msra.mxu0 0.0
    %1515 = vmatprep.subr.mxu0 0.0
    %1516 = vmatpush1.msra.mxu0 %v693
    %1517 = vmatprep.subr.mxu0 0.0
    %1518 = vmatpush2.msra.mxu0 0.0
    %1519 = vmatprep.subr.mxu0 0.0
    %1520 = vmatpush2.msra.mxu0 0.0
    %1521 = vmatprep.subr.mxu0 0.0
    %1522 = vmatpush2.msra.mxu0 0.0
    %1523 = vmatprep.subr.mxu0 0.0
    %1524 = vmatpush2.msra.mxu0 0.0
    %1525 = vmatprep.subr.mxu0 0.0
    %1526 = vmatpush2.msra.mxu0 0.0
    %1527 = vmatprep.subr.mxu0 0.0
    %1528 = vmatpush2.msra.mxu0 0.0
    %1529 = vmatprep.subr.mxu0 0.0
    %1530 = vmatpush2.msra.mxu0 0.0
    %1531 = vmatprep.subr.mxu0 0.0
    %1532 = vmatpush2.msra.mxu0 0.0
    %1533 = vmatprep.subr.mxu0 0.0
    %1534 = vmatpush2.msra.mxu0 0.0
    %1535 = vmatprep.subr.mxu0 0.0
    %1536 = vmatpush2.msra.mxu0 0.0
    %1537 = vmatprep.subr.mxu0 0.0
    %1538 = vmatpush2.msra.mxu0 0.0
    %1539 = vmatprep.subr.mxu0 0.0
    %1540 = vmatpush2.msra.mxu0 0.0
    %1541 = vmatprep.subr.mxu0 0.0
    %1542 = vmatpush2.msra.mxu0 0.0
    %1543 = vmatprep.subr.mxu0 0.0
    %1544 = vmatpush2.msra.mxu0 0.0
    %1545 = vmatprep.subr.mxu0 0.0
    %1546 = vmatpush2.msra.mxu0 0.0
    %1547 = vmatprep.subr.mxu0 0.0
    %1548 = vmatpush2.msra.mxu0 0.0
    %1549 = vmatprep.mubr.f32.mxu0 0.0
    %1550 = vmatmul.mubr.f32.gmra.mxu0 %v1483
    %v1551 = vpop.f32.mrf.mxu0
    %v1552 = vadd.f32 0.0, %v1551
    %v1553 = vpop.f32.mrf.mxu0
    %1554 = vdwg.mxu0
    %v1555 = vlaneseq
    %v1556 = vshrl.u32 %v1555, 7
    %v1557 = vsub.s32 0, %v1556
    %v1558 = vrot.slane %v1479, %v1557
    %v1559 = vmul.f32 %v1232, %v1558
    %v1560 = vmul.f32 %v1233, %v1558
    %v1561 = vmul.f32 %v1234, %v1558
    %v1562 = vmul.f32 %v1235, %v1558
    %v1563 = vlaneseq
    %v1564 = vshrl.u32 %v1563, 7
    %v1565 = vsub.s32 0, %v1564
    %v1566 = vrot.slane %v1552, %v1565
    %v1567 = vadd.f32 %v1559, %v1566
    %v1568 = vadd.f32 %v1560, %v1566
    %v1569 = vadd.f32 %v1561, %v1566
    %v1570 = vadd.f32 %v1562, %v1566
    %v1571 = vadd.f32 %v1567, %v123
    %v1572 = vadd.f32 %v1568, %v124
    %v1573 = vadd.f32 %v1569, %v125
    %v1574 = vadd.f32 %v1570, %v126
    %v1575 = vmax.f32 %v1571, 0.0
    %v1576 = vmax.f32 %v1572, 0.0
    %v1577 = vmax.f32 %v1573, 0.0
    %v1578 = vmax.f32 %v1574, 0.0
    %1579 = vst [vmem:[#allocation7] sm:$0xff] %v1575
    %1580 = vst [vmem:[#allocation7 + $0x8] sm:$0xff] %v1576
    %1581 = vst [vmem:[#allocation7 + $0x10] sm:$0xff] %v1577
    %1582 = vst [vmem:[#allocation7 + $0x18] sm:$0xff] %v1578
    // Predicated region
    $region46: #{tpu_custom_call.1} parent=1 // pred_check
      _
    $region47: #{tpu_custom_call.1} parent=1 // pred_check_branch
      %1584 = sbr.rel (0) target = $region49
    $region48: #{tpu_custom_call.1} parent=1 // pred_region
      %s1586 = ssub.s32 512, 512
      %1587 = vsyncadd [#allocation4], %s1586
      %s1588 = sshll.u32 [#allocation7], 4
      %s1589 = int_to_ptr.vmem [resolvable:$true] %s1588
      %1594 = dma.vmem_to_hbm [thread:$0]  %s1589, 512, %s9, [#allocation4], 128, 128, 8
    $region49: #{tpu_custom_call.1} parent=1 // pred_fallthru
      _
    // Predicated region
    $region50: #{tpu_custom_call.1} parent=1 // pred_check
      _
    $region51: #{tpu_custom_call.1} parent=1 // pred_check_branch
      %1596 = sbr.rel (0) target = $region53
    $region52: #{tpu_custom_call.1} parent=1 // pred_region
      %1597 = dma.done [#allocation4], 512
    $region53: #{tpu_custom_call.1} parent=1 // pred_fallthru
      _
    %1598 = vsyncpa [#allocation3], 1
    %1599 = vsyncpa [#allocation6], 1
    %1600 = vsyncpa [#allocation4], 1

</llo_original>
